<compile_context>
chip_gen: v7x
topology: tpu7x:2x2x1
jax: 0.10.0
libtpu: 0.0.40
codegen_flags: <defaults>
</compile_context>

<pallas_src>
import functools

import jax
import jax.numpy as jnp
from jax.experimental import pallas as pl
from jax.experimental.pallas import tpu as pltpu

EPS = 1e-5
NPH = 8                      # 2x2x2 output phases of a stride-2 transposed conv
VMEM_LIMIT = 48 * 1024 * 1024  # safe on v7x (64 MiB physical), plenty on v5e/v6e


# ----------------------------- Pallas kernels ------------------------------ #
def _accumulate_y(slab_refs, v_ref, hw, w_sz):
    """y[(h, w), :] = sum over the 9 (dd, dh) tap groups of slab-slice @ V.

    slab_refs[dd] is the flattened (hz, w) plane at depth d+dd with shape
    ((H+2)*W, 3*Cin); the (h+dh) shift is the contiguous row slice
    [dh*W : dh*W + H*W] (sublane aligned when W % 8 == 0).  f32 accumulation.
    """
    ncomb = v_ref.shape[-1]
    y = jnp.zeros((hw, ncomb), jnp.float32)
    for dd in range(3):
        for dh in range(3):
            lhs = slab_refs[dd][dh * w_sz: dh * w_sz + hw, :]
            y = y + jnp.dot(lhs, v_ref[dd * 3 + dh],
                            preferred_element_type=jnp.float32)
    return y


def _stats_kernel(s0_ref, s1_ref, s2_ref, v_ref, stats_ref, *, hw, w_sz):
    """Pass 1: per-batch column sum / sum-of-squares of y (resident accumulator)."""
    @pl.when(pl.program_id(1) == 0)
    def _init():
        stats_ref[...] = jnp.zeros_like(stats_ref)

    y = _accumulate_y((s0_ref, s1_ref, s2_ref), v_ref, hw, w_sz)
    s = jnp.sum(y, axis=0, keepdims=True)
    ss = jnp.sum(y * y, axis=0, keepdims=True)
    stats_ref[...] += jnp.concatenate([s, ss], axis=0)


def _apply_kernel(s0_ref, s1_ref, s2_ref, v_ref, shift_ref, wb_ref, o_ref,
                  *, hw, w_sz):
    """Pass 2: y (BN scale pre-folded) + shift, ReLU, block-diag concat/1x1x1 conv."""
    y = _accumulate_y((s0_ref, s1_ref, s2_ref), v_ref, hw, w_sz)
    z = jnp.maximum(y + shift_ref[...], 0.0)          # folded BN: one vadd + ReLU
    out = jnp.dot(z.astype(wb_ref.dtype), wb_ref[...],
                  preferred_element_type=jnp.float32)
    o_ref[...] = out.astype(o_ref.dtype)              # bf16 store (half the bytes)


# ------------------------------- JAX glue ----------------------------------- #
def _phase_weights(w_t, ks, stride=2):
    """ConvTranspose3d weight (Cin,Cout,ks,ks,ks) -> per-phase 3x3x3 stride-1 taps.

    Returns (27*Cin, 8, Cout).  Row index = ((dd*3+dh)*3+dw)*Cin + ci with
    dd/dh/dw in 0..2 the offsets into the 1-padded input (id = md + dd - 1);
    phase = rd*4 + rh*2 + rw is the output sub-pixel (od = 2*md + rd, ...).
    Derivation: od + p = 2*id + kd  =>  kd = rd + p + 2 - 2*dd (zero if out of range).
    """
    cin, cout = w_t.shape[0], w_t.shape[1]
    p = (ks - stride) // 2
    out = jnp.zeros((3, 3, 3, cin, NPH, cout), w_t.dtype)
    for rd in range(2):
        for rh in range(2):
            for rw in range(2):
                ph = rd * 4 + rh * 2 + rw
                for dd in range(3):
                    kd = rd + p + 2 - 2 * dd
                    if not 0 <= kd < ks:
                        continue
                    for dh in range(3):
                        kh = rh + p + 2 - 2 * dh
                        if not 0 <= kh < ks:
                            continue
                        for dw in range(3):
                            kw = rw + p + 2 - 2 * dw
                            if not 0 <= kw < ks:
                                continue
                            out = out.at[dd, dh, dw, :, ph, :].set(
                                w_t[:, :, kd, kh, kw])
    return out.reshape(27 * cin, NPH, cout)


def _build_tap_weights(w_t4, w_t6, cin, cout):
    """Combined per-tap-group weights (9, 3*Cin, 16*Cout), f32.

    Column layout: phase*(2*Cout) + branch*Cout + cout (branch 0 = ks=4, matching
    the concat order).  Row groups are (dd, dh); rows within a group are (dw, ci),
    matching the xw channel layout.
    """
    w4p = _phase_weights(w_t4, 4)                       # (27*Cin, 8, Cout)
    w6p = _phase_weights(w_t6, 6)
    ncomb = NPH * 2 * cout
    wc = jnp.stack([w4p, w6p], axis=2).reshape(27 * cin, ncomb)
    return wc.reshape(3, 3, 3, cin, ncomb).reshape(9, 3 * cin, ncomb)


def _neighbourhood_planes(x_nchw):
    """(N,Cin,D,H,W) -> (N, D+2, (H+2)*W, 3*Cin) W-neighbourhood planes.

    Only a ~3x expansion of the (1-padded) raw input instead of the 27x / 32x
    HBM im2col; the remaining (dd, dh) taps are assembled inside the kernel from
    halo-shifted depth slabs and row slices.
    """
    n, cin, d, h, w = x_nchw.shape
    x_cl = jnp.transpose(x_nchw, (0, 2, 3, 4, 1))                    # NDHWC
    xp = jnp.pad(x_cl, ((0, 0), (1, 1), (1, 1), (1, 1), (0, 0)))     # 1-voxel halo
    xw = jnp.concatenate([xp[..., dw:dw + w, :] for dw in range(3)], axis=-1)
    return xw.reshape(n, d + 2, (h + 2) * w, 3 * cin)


def multi_scale_trans_conv(x_nchw, params):
    """Forward pass of MultiScaleTransConv.  x_nchw: (N, Cin, D, H, W) float32."""
    w_t4, g4, b4 = params["branch4"]
    w_t6, g6, b6 = params["branch6"]
    wc1 = params["conv1x1"]

    n, cin, d, h, w = x_nchw.shape
    cout = w_t4.shape[1]
    c2 = 2 * cout
    ncomb = NPH * c2          # combined matmul width (= 128 for Cout=8, lane dense)
    nout = NPH * cout         # fused output width (phases x Cout)
    hw = h * w                # rows per (n, d) grid step
    hp2w = (h + 2) * w
    c3 = 3 * cin
    assert hw % 8 == 0, "H*W must be a multiple of 8 (sublane alignment)"

    # ---- compact input + folded weights (plain JAX, runs once, small) ----
    xw = _neighbourhood_planes(x_nchw).astype(jnp.bfloat16)   # (N, D+2, (H+2)W, 3Cin)
    v_f32 = _build_tap_weights(w_t4, w_t6, cin, cout)          # (9, 3Cin, 16Cout)
    v_bf16 = v_f32.astype(jnp.bfloat16)

    wct = wc1.reshape(cout, c2).T                              # (2C, C)
    w_block = jnp.kron(jnp.eye(NPH, dtype=wct.dtype), wct).astype(jnp.bfloat16)

    def slab_spec(dd):
        # Same xw array, depth-shifted by dd: halo handled purely via the index_map.
        return pl.BlockSpec((None, None, hp2w, c3),
                            lambda ni, di: (ni, di + dd, 0, 0))

    const_v = pl.BlockSpec((9, c3, ncomb), lambda ni, di: (0, 0, 0))
    grid = (n, d)

    # ---- pass 1: BatchNorm statistics (per-batch partials -> TC-shardable) ----
    stats = pl.pallas_call(
        functools.partial(_stats_kernel, hw=hw, w_sz=w),
        out_shape=jax.ShapeDtypeStruct((n, 2, ncomb), jnp.float32),
        grid_spec=pltpu.PrefetchScalarGridSpec(
            num_scalar_prefetch=0,
            grid=grid,
            in_specs=[slab_spec(0), slab_spec(1), slab_spec(2), const_v],
            out_specs=pl.BlockSpec((None, 2, ncomb), lambda ni, di: (ni, 0, 0))),
        compiler_params=pltpu.CompilerParams(
            dimension_semantics=("parallel", "arbitrary"),
            vmem_limit_bytes=VMEM_LIMIT),
    )(xw, xw, xw, v_bf16)

    # Note: variance via E[y^2]-E[y]^2 in f32; inputs are roughly zero-mean here,
    # guarded by max(., 0).  No padded rows exist, so the count is exact.
    count = jnp.float32(n * d * h * w * NPH)        # output voxels per channel
    stats_sum = stats.sum(axis=0)                   # (2, ncomb)
    col_sum = stats_sum[0].reshape(NPH, c2).sum(axis=0)
    col_sq = stats_sum[1].reshape(NPH, c2).sum(axis=0)
    mean = col_sum / count
    var = jnp.maximum(col_sq / count - mean * mean, 0.0)
    gamma = jnp.concatenate([g4, g6]).astype(jnp.float32)
    beta = jnp.concatenate([b4, b6]).astype(jnp.float32)
    scale_c = gamma * jax.lax.rsqrt(var + EPS)
    shift_c = beta - mean * scale_c
    scale_col = jnp.tile(scale_c, NPH)                         # (ncomb,)
    shift_row = jnp.tile(shift_c, NPH).reshape(1, ncomb)       # (1, ncomb) f32
    v_scaled = (v_f32 * scale_col[None, None, :]).astype(jnp.bfloat16)

    # ---- pass 2: folded BN + ReLU + fused concat / 1x1x1 conv ----
    out_flat = pl.pallas_call(
        functools.partial(_apply_kernel, hw=hw, w_sz=w),
        out_shape=jax.ShapeDtypeStruct((n, d, hw, nout), jnp.bfloat16),
        grid_spec=pltpu.PrefetchScalarGridSpec(
            num_scalar_prefetch=0,
            grid=grid,
            in_specs=[slab_spec(0), slab_spec(1), slab_spec(2),
                      const_v,
                      pl.BlockSpec((1, ncomb), lambda ni, di: (0, 0)),
                      pl.BlockSpec((ncomb, nout), lambda ni, di: (0, 0))],
            out_specs=pl.BlockSpec((None, None, hw, nout),
                                   lambda ni, di: (ni, di, 0, 0))),
        compiler_params=pltpu.CompilerParams(
            dimension_semantics=("parallel", "parallel"),
            vmem_limit_bytes=VMEM_LIMIT),
    )(xw, xw, xw, v_scaled, shift_row, w_block)

    # Pixel-shuffle the 8 phases back into the spatial dims (bf16 -> half traffic),
    # then to NCDHW f32 to match the module's return layout/dtype.
    out = out_flat.reshape(n, d, h, w, 2, 2, 2, cout)
    out = jnp.transpose(out, (0, 7, 1, 4, 2, 5, 3, 6))
    return out.reshape(n, cout, 2 * d, 2 * h, 2 * w).astype(jnp.float32)


# -------------------- pure-JAX reference (for verification) ----------------- #
def _ref_convtranspose3d(x, w_t, stride, pad):
    n, cin, d, h, wd = x.shape
    cout, ks = w_t.shape[1], w_t.shape[2]
    df, hf, wf = (d - 1) * stride + ks, (h - 1) * stride + ks, (wd - 1) * stride + ks
    y = jnp.zeros((n, cout, df, hf, wf), jnp.float32)
    for kd in range(ks):
        for kh in range(ks):
            for kw in range(ks):
                contrib = jnp.einsum('ncijl,cm->nmijl', x, w_t[:, :, kd, kh, kw])
                y = y.at[:, :,
                         kd:kd + (d - 1) * stride + 1:stride,
                         kh:kh + (h - 1) * stride + 1:stride,
                         kw:kw + (wd - 1) * stride + 1:stride].add(contrib)
    return y[:, :, pad:df - pad, pad:hf - pad, pad:wf - pad]


def multi_scale_trans_conv_ref(x, params, stride=2):
    outs = []
    for ks, key in ((4, "branch4"), (6, "branch6")):
        w_t, g, b = params[key]
        pad = (ks - stride) // 2
        y = _ref_convtranspose3d(x, w_t, stride, pad)
        mean = jnp.mean(y, axis=(0, 2, 3, 4), keepdims=True)
        var = jnp.mean((y - mean) ** 2, axis=(0, 2, 3, 4), keepdims=True)
        y = (y - mean) * jax.lax.rsqrt(var + EPS)
        y = y * g.reshape(1, -1, 1, 1, 1) + b.reshape(1, -1, 1, 1, 1)
        outs.append(jnp.maximum(y, 0.0))
    cat = jnp.concatenate(outs, axis=1)
    wc = params["conv1x1"]
    return jnp.einsum('oc,ncdhw->nodhw', wc.reshape(wc.shape[0], wc.shape[1]), cat)


# ---------------------------------- main ------------------------------------ #
if __name__ == "__main__":
    key = jax.random.PRNGKey(0)
    keys = jax.random.split(key, 8)
    n, cin, cout, sp = 2, 4, 8, 8   # input (N, Cin, D, H, W) = (2, 4, 8, 8, 8)

    x = jax.random.normal(keys[0], (n, cin, sp, sp, sp), jnp.float32)
    params = {
        # ConvTranspose3d weights use the PyTorch layout (Cin, Cout, kD, kH, kW); no bias.
        "branch4": (0.1 * jax.random.normal(keys[1], (cin, cout, 4, 4, 4), jnp.float32),
                    1.0 + 0.1 * jax.random.normal(keys[2], (cout,), jnp.float32),
                    0.1 * jax.random.normal(keys[3], (cout,), jnp.float32)),
        "branch6": (0.1 * jax.random.normal(keys[4], (cin, cout, 6, 6, 6), jnp.float32),
                    1.0 + 0.1 * jax.random.normal(keys[5], (cout,), jnp.float32),
                    0.1 * jax.random.normal(keys[6], (cout,), jnp.float32)),
        # Conv3d 1x1x1 weight (Cout, 2*Cout, 1, 1, 1); no bias.
        "conv1x1": 0.1 * jax.random.normal(keys[7], (cout, 2 * cout, 1, 1, 1), jnp.float32),
    }

    out = jax.block_until_ready(multi_scale_trans_conv(x, params))
    ref = jax.block_until_ready(multi_scale_trans_conv_ref(x, params))

    assert out.shape == (n, cout, 2 * sp, 2 * sp, 2 * sp), out.shape
    max_err = float(jnp.max(jnp.abs(out - ref)))
    if not bool(jnp.allclose(out, ref, atol=3e-2, rtol=3e-2)):
        raise AssertionError(f"Pallas kernel mismatch vs reference, max abs err = {max_err}")
    print("KERNEL_OK")
</pallas_src>

<mosaic_0001>
module attributes {stable_mosaic.version = 11 : i64} {
  func.func @_stats_kernel(%arg0: i32, %arg1: i32, %arg2: memref<1x1x80x12xbf16, #tpu.memory_space<vmem>>, %arg3: memref<1x1x80x12xbf16, #tpu.memory_space<vmem>>, %arg4: memref<1x1x80x12xbf16, #tpu.memory_space<vmem>>, %arg5: memref<9x12x128xbf16, #tpu.memory_space<vmem>>, %arg6: memref<1x2x128xf32, #tpu.memory_space<vmem>>) attributes {dimension_semantics = [#tpu.dimension_semantics<parallel>, #tpu.dimension_semantics<arbitrary>], iteration_bounds = array<i64: 2, 8>, scalar_prefetch = 0 : i64, scratch_operands = 0 : i64, tpu.core_type = #tpu.core_type<tc>, window_params = [{transform_indices = @transform_0, window_bounds = array<i64: 1, 1, 80, 12>}, {transform_indices = @transform_1, window_bounds = array<i64: 1, 1, 80, 12>}, {transform_indices = @transform_2, window_bounds = array<i64: 1, 1, 80, 12>}, {pipeline_mode = #tpu.pipeline_mode<synchronous>, transform_indices = @transform_3, window_bounds = array<i64: 9, 12, 128>}, {transform_indices = @transform_4, window_bounds = array<i64: 1, 2, 128>}]} {
    %c0_i32 = arith.constant 0 : i32
    %0 = arith.cmpi eq, %arg1, %c0_i32 : i32
    %1 = arith.extui %0 : i1 to i32
    %c0_i32_0 = arith.constant 0 : i32
    %2 = arith.cmpi ne, %1, %c0_i32_0 : i32
    scf.if %2 {
      %cst_71 = arith.constant 0.000000e+00 : f32
      %70 = vector.broadcast %cst_71 : f32 to vector<2x128xf32>
      %c0_72 = arith.constant 0 : index
      %c0_73 = arith.constant 0 : index
      %c0_74 = arith.constant 0 : index
      %71 = vector.load %arg6[%c0_72, %c0_73, %c0_74] : memref<1x2x128xf32, #tpu.memory_space<vmem>>, vector<1x2x128xf32>
      %72 = vector.shape_cast %71 : vector<1x2x128xf32> to vector<2x128xf32>
      %73 = vector.shape_cast %70 : vector<2x128xf32> to vector<1x2x128xf32>
      tpu.vector_store %arg6[%c0_72, %c0_73, %c0_74], %73 {strides = array<i32>} : memref<1x2x128xf32, #tpu.memory_space<vmem>>, vector<1x2x128xf32>,
    } else {
    }
    %cst = arith.constant 0.000000e+00 : f32
    %3 = vector.broadcast %cst : f32 to vector<64x128xf32>
    %c0 = arith.constant 0 : index
    %c0_1 = arith.constant 0 : index
    %c0_2 = arith.constant 0 : index
    %c0_3 = arith.constant 0 : index
    %4 = vector.load %arg2[%c0, %c0_1, %c0_2, %c0_3] : memref<1x1x80x12xbf16, #tpu.memory_space<vmem>>, vector<1x1x64x12xbf16>
    %5 = vector.shape_cast %4 : vector<1x1x64x12xbf16> to vector<64x12xbf16>
    %c0_4 = arith.constant 0 : index
    %c0_5 = arith.constant 0 : index
    %c0_6 = arith.constant 0 : index
    %6 = vector.load %arg5[%c0_4, %c0_5, %c0_6] : memref<9x12x128xbf16, #tpu.memory_space<vmem>>, vector<1x12x128xbf16>
    %7 = vector.shape_cast %6 : vector<1x12x128xbf16> to vector<12x128xbf16>
    %cst_7 = arith.constant dense<0.000000e+00> : vector<64x128xf32>
    %8 = tpu.matmul %5, %7, %cst_7 {dimension_numbers = #tpu.dot_dimension_numbers<[1], [0], [0], [1], [0, 0, 1, 1], [], []>} : vector<64x12xbf16>, vector<12x128xbf16>, vector<64x128xf32> -> vector<64x128xf32>
    %9 = arith.addf %3, %8 : vector<64x128xf32>
    %c0_8 = arith.constant 0 : index
    %c0_9 = arith.constant 0 : index
    %c8 = arith.constant 8 : index
    %c0_10 = arith.constant 0 : index
    %10 = vector.load %arg2[%c0_8, %c0_9, %c8, %c0_10] : memref<1x1x80x12xbf16, #tpu.memory_space<vmem>>, vector<1x1x64x12xbf16>
    %11 = vector.shape_cast %10 : vector<1x1x64x12xbf16> to vector<64x12xbf16>
    %c1 = arith.constant 1 : index
    %c0_11 = arith.constant 0 : index
    %c0_12 = arith.constant 0 : index
    %12 = vector.load %arg5[%c1, %c0_11, %c0_12] : memref<9x12x128xbf16, #tpu.memory_space<vmem>>, vector<1x12x128xbf16>
    %13 = vector.shape_cast %12 : vector<1x12x128xbf16> to vector<12x128xbf16>
    %cst_13 = arith.constant dense<0.000000e+00> : vector<64x128xf32>
    %14 = tpu.matmul %11, %13, %cst_13 {dimension_numbers = #tpu.dot_dimension_numbers<[1], [0], [0], [1], [0, 0, 1, 1], [], []>} : vector<64x12xbf16>, vector<12x128xbf16>, vector<64x128xf32> -> vector<64x128xf32>
    %15 = arith.addf %9, %14 : vector<64x128xf32>
    %c0_14 = arith.constant 0 : index
    %c0_15 = arith.constant 0 : index
    %c16 = arith.constant 16 : index
    %c0_16 = arith.constant 0 : index
    %16 = vector.load %arg2[%c0_14, %c0_15, %c16, %c0_16] : memref<1x1x80x12xbf16, #tpu.memory_space<vmem>>, vector<1x1x64x12xbf16>
    %17 = vector.shape_cast %16 : vector<1x1x64x12xbf16> to vector<64x12xbf16>
    %c2 = arith.constant 2 : index
    %c0_17 = arith.constant 0 : index
    %c0_18 = arith.constant 0 : index
    %18 = vector.load %arg5[%c2, %c0_17, %c0_18] : memref<9x12x128xbf16, #tpu.memory_space<vmem>>, vector<1x12x128xbf16>
    %19 = vector.shape_cast %18 : vector<1x12x128xbf16> to vector<12x128xbf16>
    %cst_19 = arith.constant dense<0.000000e+00> : vector<64x128xf32>
    %20 = tpu.matmul %17, %19, %cst_19 {dimension_numbers = #tpu.dot_dimension_numbers<[1], [0], [0], [1], [0, 0, 1, 1], [], []>} : vector<64x12xbf16>, vector<12x128xbf16>, vector<64x128xf32> -> vector<64x128xf32>
    %21 = arith.addf %15, %20 : vector<64x128xf32>
    %c0_20 = arith.constant 0 : index
    %c0_21 = arith.constant 0 : index
    %c0_22 = arith.constant 0 : index
    %c0_23 = arith.constant 0 : index
    %22 = vector.load %arg3[%c0_20, %c0_21, %c0_22, %c0_23] : memref<1x1x80x12xbf16, #tpu.memory_space<vmem>>, vector<1x1x64x12xbf16>
    %23 = vector.shape_cast %22 : vector<1x1x64x12xbf16> to vector<64x12xbf16>
    %c3 = arith.constant 3 : index
    %c0_24 = arith.constant 0 : index
    %c0_25 = arith.constant 0 : index
    %24 = vector.load %arg5[%c3, %c0_24, %c0_25] : memref<9x12x128xbf16, #tpu.memory_space<vmem>>, vector<1x12x128xbf16>
    %25 = vector.shape_cast %24 : vector<1x12x128xbf16> to vector<12x128xbf16>
    %cst_26 = arith.constant dense<0.000000e+00> : vector<64x128xf32>
    %26 = tpu.matmul %23, %25, %cst_26 {dimension_numbers = #tpu.dot_dimension_numbers<[1], [0], [0], [1], [0, 0, 1, 1], [], []>} : vector<64x12xbf16>, vector<12x128xbf16>, vector<64x128xf32> -> vector<64x128xf32>
    %27 = arith.addf %21, %26 : vector<64x128xf32>
    %c0_27 = arith.constant 0 : index
    %c0_28 = arith.constant 0 : index
    %c8_29 = arith.constant 8 : index
    %c0_30 = arith.constant 0 : index
    %28 = vector.load %arg3[%c0_27, %c0_28, %c8_29, %c0_30] : memref<1x1x80x12xbf16, #tpu.memory_space<vmem>>, vector<1x1x64x12xbf16>
    %29 = vector.shape_cast %28 : vector<1x1x64x12xbf16> to vector<64x12xbf16>
    %c4 = arith.constant 4 : index
    %c0_31 = arith.constant 0 : index
    %c0_32 = arith.constant 0 : index
    %30 = vector.load %arg5[%c4, %c0_31, %c0_32] : memref<9x12x128xbf16, #tpu.memory_space<vmem>>, vector<1x12x128xbf16>
    %31 = vector.shape_cast %30 : vector<1x12x128xbf16> to vector<12x128xbf16>
    %cst_33 = arith.constant dense<0.000000e+00> : vector<64x128xf32>
    %32 = tpu.matmul %29, %31, %cst_33 {dimension_numbers = #tpu.dot_dimension_numbers<[1], [0], [0], [1], [0, 0, 1, 1], [], []>} : vector<64x12xbf16>, vector<12x128xbf16>, vector<64x128xf32> -> vector<64x128xf32>
    %33 = arith.addf %27, %32 : vector<64x128xf32>
    %c0_34 = arith.constant 0 : index
    %c0_35 = arith.constant 0 : index
    %c16_36 = arith.constant 16 : index
    %c0_37 = arith.constant 0 : index
    %34 = vector.load %arg3[%c0_34, %c0_35, %c16_36, %c0_37] : memref<1x1x80x12xbf16, #tpu.memory_space<vmem>>, vector<1x1x64x12xbf16>
    %35 = vector.shape_cast %34 : vector<1x1x64x12xbf16> to vector<64x12xbf16>
    %c5 = arith.constant 5 : index
    %c0_38 = arith.constant 0 : index
    %c0_39 = arith.constant 0 : index
    %36 = vector.load %arg5[%c5, %c0_38, %c0_39] : memref<9x12x128xbf16, #tpu.memory_space<vmem>>, vector<1x12x128xbf16>
    %37 = vector.shape_cast %36 : vector<1x12x128xbf16> to vector<12x128xbf16>
    %cst_40 = arith.constant dense<0.000000e+00> : vector<64x128xf32>
    %38 = tpu.matmul %35, %37, %cst_40 {dimension_numbers = #tpu.dot_dimension_numbers<[1], [0], [0], [1], [0, 0, 1, 1], [], []>} : vector<64x12xbf16>, vector<12x128xbf16>, vector<64x128xf32> -> vector<64x128xf32>
    %39 = arith.addf %33, %38 : vector<64x128xf32>
    %c0_41 = arith.constant 0 : index
    %c0_42 = arith.constant 0 : index
    %c0_43 = arith.constant 0 : index
    %c0_44 = arith.constant 0 : index
    %40 = vector.load %arg4[%c0_41, %c0_42, %c0_43, %c0_44] : memref<1x1x80x12xbf16, #tpu.memory_space<vmem>>, vector<1x1x64x12xbf16>
    %41 = vector.shape_cast %40 : vector<1x1x64x12xbf16> to vector<64x12xbf16>
    %c6 = arith.constant 6 : index
    %c0_45 = arith.constant 0 : index
    %c0_46 = arith.constant 0 : index
    %42 = vector.load %arg5[%c6, %c0_45, %c0_46] : memref<9x12x128xbf16, #tpu.memory_space<vmem>>, vector<1x12x128xbf16>
    %43 = vector.shape_cast %42 : vector<1x12x128xbf16> to vector<12x128xbf16>
    %cst_47 = arith.constant dense<0.000000e+00> : vector<64x128xf32>
    %44 = tpu.matmul %41, %43, %cst_47 {dimension_numbers = #tpu.dot_dimension_numbers<[1], [0], [0], [1], [0, 0, 1, 1], [], []>} : vector<64x12xbf16>, vector<12x128xbf16>, vector<64x128xf32> -> vector<64x128xf32>
    %45 = arith.addf %39, %44 : vector<64x128xf32>
    %c0_48 = arith.constant 0 : index
    %c0_49 = arith.constant 0 : index
    %c8_50 = arith.constant 8 : index
    %c0_51 = arith.constant 0 : index
    %46 = vector.load %arg4[%c0_48, %c0_49, %c8_50, %c0_51] : memref<1x1x80x12xbf16, #tpu.memory_space<vmem>>, vector<1x1x64x12xbf16>
    %47 = vector.shape_cast %46 : vector<1x1x64x12xbf16> to vector<64x12xbf16>
    %c7 = arith.constant 7 : index
    %c0_52 = arith.constant 0 : index
    %c0_53 = arith.constant 0 : index
    %48 = vector.load %arg5[%c7, %c0_52, %c0_53] : memref<9x12x128xbf16, #tpu.memory_space<vmem>>, vector<1x12x128xbf16>
    %49 = vector.shape_cast %48 : vector<1x12x128xbf16> to vector<12x128xbf16>
    %cst_54 = arith.constant dense<0.000000e+00> : vector<64x128xf32>
    %50 = tpu.matmul %47, %49, %cst_54 {dimension_numbers = #tpu.dot_dimension_numbers<[1], [0], [0], [1], [0, 0, 1, 1], [], []>} : vector<64x12xbf16>, vector<12x128xbf16>, vector<64x128xf32> -> vector<64x128xf32>
    %51 = arith.addf %45, %50 : vector<64x128xf32>
    %c0_55 = arith.constant 0 : index
    %c0_56 = arith.constant 0 : index
    %c16_57 = arith.constant 16 : index
    %c0_58 = arith.constant 0 : index
    %52 = vector.load %arg4[%c0_55, %c0_56, %c16_57, %c0_58] : memref<1x1x80x12xbf16, #tpu.memory_space<vmem>>, vector<1x1x64x12xbf16>
    %53 = vector.shape_cast %52 : vector<1x1x64x12xbf16> to vector<64x12xbf16>
    %c8_59 = arith.constant 8 : index
    %c0_60 = arith.constant 0 : index
    %c0_61 = arith.constant 0 : index
    %54 = vector.load %arg5[%c8_59, %c0_60, %c0_61] : memref<9x12x128xbf16, #tpu.memory_space<vmem>>, vector<1x12x128xbf16>
    %55 = vector.shape_cast %54 : vector<1x12x128xbf16> to vector<12x128xbf16>
    %cst_62 = arith.constant dense<0.000000e+00> : vector<64x128xf32>
    %56 = tpu.matmul %53, %55, %cst_62 {dimension_numbers = #tpu.dot_dimension_numbers<[1], [0], [0], [1], [0, 0, 1, 1], [], []>} : vector<64x12xbf16>, vector<12x128xbf16>, vector<64x128xf32> -> vector<64x128xf32>
    %57 = arith.addf %51, %56 : vector<64x128xf32>
    %cst_63 = arith.constant dense<0.000000e+00> : vector<128xf32>
    %58 = vector.multi_reduction <add>, %57, %cst_63 [0] : vector<64x128xf32> to vector<128xf32>
    %59 = vector.shape_cast %58 : vector<128xf32> to vector<1x128xf32>
    %60 = arith.mulf %57, %57 : vector<64x128xf32>
    %cst_64 = arith.constant dense<0.000000e+00> : vector<128xf32>
    %61 = vector.multi_reduction <add>, %60, %cst_64 [0] : vector<64x128xf32> to vector<128xf32>
    %62 = vector.shape_cast %61 : vector<128xf32> to vector<1x128xf32>
    %c0_65 = arith.constant 0 : index
    %c0_66 = arith.constant 0 : index
    %c0_67 = arith.constant 0 : index
    %63 = vector.load %arg6[%c0_65, %c0_66, %c0_67] : memref<1x2x128xf32, #tpu.memory_space<vmem>>, vector<1x2x128xf32>
    %64 = vector.shape_cast %63 : vector<1x2x128xf32> to vector<2x128xf32>
    %65 = tpu.concatenate %59, %62 in 0 : vector<1x128xf32>, vector<1x128xf32> -> vector<2x128xf32>
    %66 = arith.addf %64, %65 : vector<2x128xf32>
    %c0_68 = arith.constant 0 : index
    %c0_69 = arith.constant 0 : index
    %c0_70 = arith.constant 0 : index
    %67 = vector.load %arg6[%c0_68, %c0_69, %c0_70] : memref<1x2x128xf32, #tpu.memory_space<vmem>>, vector<1x2x128xf32>
    %68 = vector.shape_cast %67 : vector<1x2x128xf32> to vector<2x128xf32>
    %69 = vector.shape_cast %66 : vector<2x128xf32> to vector<1x2x128xf32>
    tpu.vector_store %arg6[%c0_68, %c0_69, %c0_70], %69 {strides = array<i32>} : memref<1x2x128xf32, #tpu.memory_space<vmem>>, vector<1x2x128xf32>,
    return
  }
  func.func @transform_0(%arg0: i32, %arg1: i32) -> (i32, i32, i32, i32) {
    %c0_i32 = arith.constant 0 : i32
    %0 = arith.addi %arg1, %c0_i32 : i32
    %c0_i32_0 = arith.constant 0 : i32
    %c0_i32_1 = arith.constant 0 : i32
    %c0_i32_2 = arith.constant 0 : i32
    return %arg0, %0, %c0_i32_0, %c0_i32_1 : i32, i32, i32, i32
  }
  func.func @transform_1(%arg0: i32, %arg1: i32) -> (i32, i32, i32, i32) {
    %c1_i32 = arith.constant 1 : i32
    %0 = arith.addi %arg1, %c1_i32 : i32
    %c0_i32 = arith.constant 0 : i32
    %c0_i32_0 = arith.constant 0 : i32
    %c0_i32_1 = arith.constant 0 : i32
    return %arg0, %0, %c0_i32, %c0_i32_0 : i32, i32, i32, i32
  }
  func.func @transform_2(%arg0: i32, %arg1: i32) -> (i32, i32, i32, i32) {
    %c2_i32 = arith.constant 2 : i32
    %0 = arith.addi %arg1, %c2_i32 : i32
    %c0_i32 = arith.constant 0 : i32
    %c0_i32_0 = arith.constant 0 : i32
    %c0_i32_1 = arith.constant 0 : i32
    return %arg0, %0, %c0_i32, %c0_i32_0 : i32, i32, i32, i32
  }
  func.func @transform_3(%arg0: i32, %arg1: i32) -> (i32, i32, i32) {
    %c0_i32 = arith.constant 0 : i32
    %c0_i32_0 = arith.constant 0 : i32
    %c0_i32_1 = arith.constant 0 : i32
    %c0_i32_2 = arith.constant 0 : i32
    return %c0_i32, %c0_i32_0, %c0_i32_1 : i32, i32, i32
  }
  func.func @transform_4(%arg0: i32, %arg1: i32) -> (i32, i32, i32) {
    %c0_i32 = arith.constant 0 : i32
    %c0_i32_0 = arith.constant 0 : i32
    %c0_i32_1 = arith.constant 0 : i32
    return %arg0, %c0_i32, %c0_i32_0 : i32, i32, i32
  }
}

</mosaic_0001>

<llo_original>
// kernel: tpu_custom_call.1
$region0: #{tpu_custom_call.1}
  #allocation0 [shape = 'u32[]', space=smem, size = 0x4, offset = 0x4, fixed_abs, tag = 'smem constant byte address 0x4 - core index']
  #allocation1 [shape = 'u32[144,128]{1,0:T(1,128)}', space=vmem, size = 0x12000, scoped, tag = 'internal scratch']
  %s0 = inlined_call_operand.vmem [shape: bf16[2,10,80,12], index: 0, kind: input, shape index: {}]
  %s1 = inlined_call_operand.vmem [shape: bf16[2,10,80,12], index: 1, kind: input, shape index: {}]
  %s2 = inlined_call_operand.vmem [shape: bf16[2,10,80,12], index: 2, kind: input, shape index: {}]
  %s3 = inlined_call_operand.vmem [shape: bf16[9,12,128], index: 3, kind: input, shape index: {}]
  %s4 = inlined_call_operand.hbm [shape: f32[2,2,128], index: 4, kind: output, shape index: {}]
  %s5 = sld [smem:[#allocation0]]
  $region53: #{tpu_custom_call.1} parent=0
    _
  %s7 = ssub.s32 1, %s5
  %s8 = scalar_select 0, %s7, %s5
  $region1: #{tpu_custom_call.1} parent=0
    #allocation2 [shape = 'u8[2048]{0}', space=vmem, size = 0x800, scoped, tag = 'output window, operand 0']
    #allocation3 [shape = 's32[2]{0}', space=sflag, size = 0x8, scoped, tag = 'scoped memory for tpu_custom_call.1']
    %9 = vsyncpa [#allocation3], 0
    %s10 = scalar_lea.sflag [#allocation3], 1
    %11 = vsyncpa %s10, 0
    loop: start=0, step=1, limit=18
    $region2: #{tpu_custom_call.1} parent=1 // loop_pre_header
      _
    $region3: #{tpu_custom_call.1} parent=1 // loop_header
      %s13 = sphi 0, %s17
      %p14 = scmp.ge.s32.totalorder %s13, 18
      %s20 = sphi 0, %s32
      %s21 = sphi 0, %s28
      %s22 = sphi 0, %s20
      %s23 = sphi 0, %s21
      %s24 = sphi 0, %s22
      %s25 = sphi 0, %s23
      %s37 = sphi 0, %s39
      %s40 = sphi 0, %s37
      %s41 = sphi 0, %s40
      %s57 = sphi 0, %s41
      %s67 = sphi 0, %s69
      %s70 = sphi 0, %s67
      %s71 = sphi 0, %s70
      %s87 = sphi 0, %s71
      %s97 = sphi 0, %s99
      %s100 = sphi 0, %s97
      %s101 = sphi 0, %s100
      %s117 = sphi 0, %s101
      %s121 = sphi 0, %s121
      %s123 = sphi 0, %s121
      %s124 = sphi 0, %s123
      %s138 = sphi 0, %s124
      %s144 = sphi 0, %s146
      %s147 = sphi 0, %s144
      %s148 = sphi 0, %s147
      %s164 = sphi 0, %s148
    $region4: #{tpu_custom_call.1} parent=1 // loop_header_branch
      %16 = sbr.rel (%p14) target = $region8
    $region5: #{tpu_custom_call.1} parent=1 // loop_body
      %s18 = ssub.s32 %s13, 1
      %s19 = ssub.s32 %s13, 2
      %s26 = sadd.s32 1, %s21
      %p27 = scmp.ge.s32.totalorder %s26, 8
      %s28 = scalar_select %p27, 0, %s26
      %s29 = sadd.s32 1, %s20
      %s30 = scalar_select %p27, %s29, %s20
      %p31 = scmp.ge.s32.totalorder %s30, 2
      %s32 = scalar_select %p31, 0, %s30
      %s33 = ssub.s32 %s20, %s32
      %s34 = ssub.s32 %s21, %s28
      %s35 = sor.u32 %s33, %s34
      %p36 = scmp.eq.s32.totalorder %s35, 0
      %s38 = sadd.s32 %s37, 1
      %s39 = scalar_select %p36, %s37, %s38
      %p42 = pneg %p36
      %p43 = scmp.eq.s32.totalorder %s13, 15
      %p44 = por %p42, %p43
      %p45 = scmp.ne.s32.totalorder %s37, %s40
      %p46 = scmp.eq.s32.totalorder %s13, 0
      %p47 = por %p45, %p46
      %p48 = scmp.ne.s32.totalorder %s37, %s40
      %p49 = scmp.eq.s32.totalorder %s18, 15
      %p50 = por %p48, %p49
      %p51 = scmp.ne.s32.totalorder %s40, %s41
      %p52 = scmp.eq.s32.totalorder %s18, 0
      %p53 = por %p51, %p52
      %p54 = scmp.ne.s32.totalorder %s40, %s41
      %p55 = scmp.eq.s32.totalorder %s19, 15
      %p56 = por %p54, %p55
      %p58 = scmp.ne.s32.totalorder %s41, %s57
      %p59 = scmp.eq.s32.totalorder %s19, 0
      %p60 = por %p58, %p59
      %s61 = sadd.s32 %s21, 1
      %s62 = sadd.s32 %s28, 1
      %s63 = ssub.s32 %s20, %s32
      %s64 = ssub.s32 %s61, %s62
      %s65 = sor.u32 %s63, %s64
      %p66 = scmp.eq.s32.totalorder %s65, 0
      %s68 = sadd.s32 %s67, 1
      %s69 = scalar_select %p66, %s67, %s68
      %p72 = pneg %p66
      %p73 = scmp.eq.s32.totalorder %s13, 15
      %p74 = por %p72, %p73
      %p75 = scmp.ne.s32.totalorder %s67, %s70
      %p76 = scmp.eq.s32.totalorder %s13, 0
      %p77 = por %p75, %p76
      %p78 = scmp.ne.s32.totalorder %s67, %s70
      %p79 = scmp.eq.s32.totalorder %s18, 15
      %p80 = por %p78, %p79
      %p81 = scmp.ne.s32.totalorder %s70, %s71
      %p82 = scmp.eq.s32.totalorder %s18, 0
      %p83 = por %p81, %p82
      %p84 = scmp.ne.s32.totalorder %s70, %s71
      %p85 = scmp.eq.s32.totalorder %s19, 15
      %p86 = por %p84, %p85
      %p88 = scmp.ne.s32.totalorder %s71, %s87
      %p89 = scmp.eq.s32.totalorder %s19, 0
      %p90 = por %p88, %p89
      %s91 = sadd.s32 %s21, 2
      %s92 = sadd.s32 %s28, 2
      %s93 = ssub.s32 %s20, %s32
      %s94 = ssub.s32 %s91, %s92
      %s95 = sor.u32 %s93, %s94
      %p96 = scmp.eq.s32.totalorder %s95, 0
      %s98 = sadd.s32 %s97, 1
      %s99 = scalar_select %p96, %s97, %s98
      %p102 = pneg %p96
      %p103 = scmp.eq.s32.totalorder %s13, 15
      %p104 = por %p102, %p103
      %p105 = scmp.ne.s32.totalorder %s97, %s100
      %p106 = scmp.eq.s32.totalorder %s13, 0
      %p107 = por %p105, %p106
      %p108 = scmp.ne.s32.totalorder %s97, %s100
      %p109 = scmp.eq.s32.totalorder %s18, 15
      %p110 = por %p108, %p109
      %p111 = scmp.ne.s32.totalorder %s100, %s101
      %p112 = scmp.eq.s32.totalorder %s18, 0
      %p113 = por %p111, %p112
      %p114 = scmp.ne.s32.totalorder %s100, %s101
      %p115 = scmp.eq.s32.totalorder %s19, 15
      %p116 = por %p114, %p115
      %p118 = scmp.ne.s32.totalorder %s101, %s117
      %p119 = scmp.eq.s32.totalorder %s19, 0
      %p120 = por %p118, %p119
      %s122 = sadd.s32 %s121, 1
      %p125 = scmp.eq.s32.totalorder %s13, 15
      %p126 = scmp.ne.s32.totalorder %s121, %s123
      %p127 = scmp.eq.s32.totalorder %s13, 0
      %p128 = por %p126, %p127
      %p129 = scmp.ne.s32.totalorder %s121, %s123
      %p130 = scmp.eq.s32.totalorder %s18, 15
      %p131 = por %p129, %p130
      %p132 = scmp.ne.s32.totalorder %s123, %s124
      %p133 = scmp.eq.s32.totalorder %s18, 0
      %p134 = por %p132, %p133
      %p135 = scmp.ne.s32.totalorder %s123, %s124
      %p136 = scmp.eq.s32.totalorder %s19, 15
      %p137 = por %p135, %p136
      %p139 = scmp.ne.s32.totalorder %s124, %s138
      %p140 = scmp.eq.s32.totalorder %s19, 0
      %p141 = por %p139, %p140
      %s142 = ssub.s32 %s20, %s32
      %p143 = scmp.eq.s32.totalorder %s142, 0
      %s145 = sadd.s32 %s144, 1
      %s146 = scalar_select %p143, %s144, %s145
      %p149 = pneg %p143
      %p150 = scmp.eq.s32.totalorder %s13, 15
      %p151 = por %p149, %p150
      %p152 = scmp.ne.s32.totalorder %s144, %s147
      %p153 = scmp.eq.s32.totalorder %s13, 0
      %p154 = por %p152, %p153
      %p155 = scmp.ne.s32.totalorder %s144, %s147
      %p156 = scmp.eq.s32.totalorder %s18, 15
      %p157 = por %p155, %p156
      %p158 = scmp.ne.s32.totalorder %s147, %s148
      %p159 = scmp.eq.s32.totalorder %s18, 0
      %p160 = por %p158, %p159
      %p161 = scmp.ne.s32.totalorder %s147, %s148
      %p162 = scmp.eq.s32.totalorder %s19, 15
      %p163 = por %p161, %p162
      %p165 = scmp.ne.s32.totalorder %s148, %s164
      %p166 = scmp.eq.s32.totalorder %s19, 0
      %p167 = por %p165, %p166
      %p168 = scmp.le.s32.totalorder 1, %s13
      %p169 = scmp.lt.s32.totalorder %s13, 17
      %p170 = pnand %p168, %p169
      %p171 = pneg %p170
      // Predicated region
      $region9: #{tpu_custom_call.1} parent=5 // pred_check
        _
      $region10: #{tpu_custom_call.1} parent=5 // pred_check_branch
        %173 = sbr.rel (%p170) target = $region12
      $region11: #{tpu_custom_call.1} parent=5 // pred_region
        %s174 = ssub.s32 %s13, 1
        // Predicated region
        $region13: #{tpu_custom_call.1} parent=11 // pred_check
          %p175 = pneg %p134
        $region14: #{tpu_custom_call.1} parent=11 // pred_check_branch
          %177 = sbr.rel (%p175) target = $region16
        $region15: #{tpu_custom_call.1} parent=11 // pred_region
          _
        $region16: #{tpu_custom_call.1} parent=11 // pred_fallthru
          _
      $region12: #{tpu_custom_call.1} parent=5 // pred_fallthru
        _
      %p178 = scmp.lt.s32.totalorder %s13, 16
      // Predicated region
      $region17: #{tpu_custom_call.1} parent=5 // pred_check
        %p179 = pneg %p178
      $region18: #{tpu_custom_call.1} parent=5 // pred_check_branch
        %181 = sbr.rel (%p179) target = $region20
      $region19: #{tpu_custom_call.1} parent=5 // pred_region
        // Predicated region
        $region21: #{tpu_custom_call.1} parent=19 // pred_check
          %p182 = pneg %p47
        $region22: #{tpu_custom_call.1} parent=19 // pred_check_branch
          %184 = sbr.rel (%p182) target = $region24
        $region23: #{tpu_custom_call.1} parent=19 // pred_region
          %p185 = scmp.lt.s32.totalorder %s20, 1
          %s186 = scalar_select %p185, %s20, 1
          %p187 = scmp.lt.s32.totalorder %s21, 9
          %s188 = scalar_select %p187, %s21, 9
          %s189 = smul.addr %s188, 10
          %s190 = smul.addr %s186, 100
          %s191 = sadd.s32 %s189, %s190
          %s192 = smul.addr %s191, 4
          %s193 = scalar_lea.vmem %s0, %s192
        $region24: #{tpu_custom_call.1} parent=19 // pred_fallthru
          _
        // Predicated region
        $region25: #{tpu_custom_call.1} parent=19 // pred_check
          %p194 = pneg %p77
        $region26: #{tpu_custom_call.1} parent=19 // pred_check_branch
          %196 = sbr.rel (%p194) target = $region28
        $region27: #{tpu_custom_call.1} parent=19 // pred_region
          %s197 = sadd.s32 %s21, 1
          %p198 = scmp.lt.s32.totalorder %s20, 1
          %s199 = scalar_select %p198, %s20, 1
          %p200 = scmp.lt.s32.totalorder %s197, 9
          %s201 = scalar_select %p200, %s197, 9
          %s202 = smul.addr %s201, 10
          %s203 = smul.addr %s199, 100
          %s204 = sadd.s32 %s202, %s203
          %s205 = smul.addr %s204, 4
          %s206 = scalar_lea.vmem %s1, %s205
          %s207 = sadd.s32 %s21, 1
        $region28: #{tpu_custom_call.1} parent=19 // pred_fallthru
          _
        // Predicated region
        $region29: #{tpu_custom_call.1} parent=19 // pred_check
          %p208 = pneg %p107
        $region30: #{tpu_custom_call.1} parent=19 // pred_check_branch
          %210 = sbr.rel (%p208) target = $region32
        $region31: #{tpu_custom_call.1} parent=19 // pred_region
          %s211 = sadd.s32 %s21, 2
          %p212 = scmp.lt.s32.totalorder %s20, 1
          %s213 = scalar_select %p212, %s20, 1
          %p214 = scmp.lt.s32.totalorder %s211, 9
          %s215 = scalar_select %p214, %s211, 9
          %s216 = smul.addr %s215, 10
          %s217 = smul.addr %s213, 100
          %s218 = sadd.s32 %s216, %s217
          %s219 = smul.addr %s218, 4
          %s220 = scalar_lea.vmem %s2, %s219
          %s221 = sadd.s32 %s21, 2
        $region32: #{tpu_custom_call.1} parent=19 // pred_fallthru
          _
      $region20: #{tpu_custom_call.1} parent=5 // pred_fallthru
        _
      %p222 = scmp.le.s32.totalorder 1, %s13
      %p223 = scmp.lt.s32.totalorder %s13, 17
      %p224 = pnand %p222, %p223
      %p225 = pneg %p224
      // Predicated region
      $region33: #{tpu_custom_call.1} parent=5 // pred_check
        _
      $region34: #{tpu_custom_call.1} parent=5 // pred_check_branch
        %227 = sbr.rel (%p224) target = $region36
      $region35: #{tpu_custom_call.1} parent=5 // pred_region
        %s228 = ssub.s32 %s13, 1
        %p229 = scmp.lt.s32.totalorder %s22, 1
        %s230 = scalar_select %p229, %s22, 1
        %p231 = scmp.lt.s32.totalorder %s23, 9
        %s232 = scalar_select %p231, %s23, 9
        %s233 = smul.addr %s232, 10
        %s234 = smul.addr %s230, 100
        %s235 = sadd.s32 %s233, %s234
        %s236 = smul.addr %s235, 4
        %s237 = scalar_lea.vmem %s0, %s236
        %p238 = pneg %p53
        %p239 = pneg %p50
        %s240 = sadd.s32 %s23, 1
        %p241 = scmp.lt.s32.totalorder %s22, 1
        %s242 = scalar_select %p241, %s22, 1
        %p243 = scmp.lt.s32.totalorder %s240, 9
        %s244 = scalar_select %p243, %s240, 9
        %s245 = smul.addr %s244, 10
        %s246 = smul.addr %s242, 100
        %s247 = sadd.s32 %s245, %s246
        %s248 = smul.addr %s247, 4
        %s249 = scalar_lea.vmem %s1, %s248
        %p250 = pneg %p83
        %p251 = pneg %p80
        %s252 = sadd.s32 %s23, 2
        %p253 = scmp.lt.s32.totalorder %s22, 1
        %s254 = scalar_select %p253, %s22, 1
        %p255 = scmp.lt.s32.totalorder %s252, 9
        %s256 = scalar_select %p255, %s252, 9
        %s257 = smul.addr %s256, 10
        %s258 = smul.addr %s254, 100
        %s259 = sadd.s32 %s257, %s258
        %s260 = smul.addr %s259, 4
        %s261 = scalar_lea.vmem %s2, %s260
        %p262 = pneg %p113
        %p263 = pneg %p110
        %p264 = pneg %p134
        %p265 = pneg %p131
        %p266 = pneg %p160
        %p267 = pneg %p157
        %s268 = sand.u32 %s147, 1
        %s269 = scalar_lea.sflag [#allocation3], %s268
        %s270 = sand.u32 %s147, 1
        %s271 = smul.addr %s270, 2
        %s272 = scalar_lea.vmem [#allocation2], %s271
        %p273 = scmp.lt.s32.totalorder %s22, 1
        %s274 = scalar_select %p273, %s22, 1
        %p275 = scmp.lt.s32.totalorder %s23, 9
        %s276 = scalar_select %p275, %s23, 9
        %s277 = smul.addr %s276, 10
        %s278 = smul.addr %s274, 100
        %s279 = sadd.s32 %s277, %s278
        %s280 = smul.addr %s279, 4
        %s281 = scalar_lea.vmem %s0, %s280
        %s282 = sadd.s32 %s23, 1
        %p283 = scmp.lt.s32.totalorder %s22, 1
        %s284 = scalar_select %p283, %s22, 1
        %p285 = scmp.lt.s32.totalorder %s282, 9
        %s286 = scalar_select %p285, %s282, 9
        %s287 = smul.addr %s286, 10
        %s288 = smul.addr %s284, 100
        %s289 = sadd.s32 %s287, %s288
        %s290 = smul.addr %s289, 4
        %s291 = scalar_lea.vmem %s1, %s290
        %s292 = sadd.s32 %s23, 1
        %s293 = sadd.s32 %s23, 2
        %p294 = scmp.lt.s32.totalorder %s22, 1
        %s295 = scalar_select %p294, %s22, 1
        %p296 = scmp.lt.s32.totalorder %s293, 9
        %s297 = scalar_select %p296, %s293, 9
        %s298 = smul.addr %s297, 10
        %s299 = smul.addr %s295, 100
        %s300 = sadd.s32 %s298, %s299
        %s301 = smul.addr %s300, 4
        %s302 = scalar_lea.vmem %s2, %s301
        %s303 = sadd.s32 %s23, 2
        %p305 = scmp.eq.s32.totalorder %s23, 0
        // Predicated region
        $region37: #{tpu_custom_call.1} parent=35 // pred_check
          %p306 = pneg %p305
        $region38: #{tpu_custom_call.1} parent=35 // pred_check_branch
          %308 = sbr.rel (%p306) target = $region40
        $region39: #{tpu_custom_call.1} parent=35 // pred_region
          %309 = vst [vmem:[%s272] sm:$0x3] 0.0
        $region40: #{tpu_custom_call.1} parent=35 // pred_fallthru
          _
        %v310 = vld [vmem:[%s281] sm:$0xf]
        %v311 = vld [vmem:[%s281 + $0x4] sm:$0xf]
        %v312 = vld [vmem:[%s281 + $0x8] sm:$0xf]
        %v313 = vld [vmem:[%s281 + $0xc] sm:$0xf]
        %v314 = vld [vmem:[%s281 + $0x10] sm:$0xf]
        %v315 = vld [vmem:[%s281 + $0x14] sm:$0xf]
        %v316 = vld [vmem:[%s281 + $0x18] sm:$0xf]
        %v317 = vld [vmem:[%s281 + $0x1c] sm:$0xf]
        %v318 = vld [vmem:[%s3] sm:$0xf]
        %v319 = vld [vmem:[%s3 + $0x4] sm:$0x3]
        %v320 = vld [vmem:[%s281 + $0x20] sm:$0xf]
        %s321 = scalar_lea.vmem %s3, 8
        %v322 = vld [vmem:[%s321] sm:$0xf]
        %v323 = vld [vmem:[%s321 + $0x4] sm:$0x3]
        %v332 = vunpack.c.l.b16 %v311
        %v333 = vunpack.c.l.b16 %v312
        %v334 = vunpack.c.l.b16 %v313
        %v335 = vunpack.c.l.b16 %v314
        %v336 = vunpack.c.l.b16 %v315
        %v337 = vunpack.c.l.b16 %v316
        %v338 = vunpack.c.l.b16 %v317
        %v339 = vunpack.c.l.b16 %v320
        %v340 = vpack.c.b16 %v333, %v332
        %v341 = vpack.c.b16 %v335, %v334
        %v342 = vpack.c.b16 %v337, %v336
        %v343 = vpack.c.b16 %v339, %v338
        %v346 = vunpack.c.l.b16 %v322
        %v347 = vunpack.c.l.b16 %v323
        %v348 = vpack.c.b16 %v347, %v346
        %vm349 = vcmask 97280
        %v351 = vsel %vm349, %v340, 0
        %v354 = vsel %vm349, %v341, 0
        %v357 = vsel %vm349, %v342, 0
        %v360 = vsel %vm349, %v343, 0
        %vm362 = vcmask 1045504
        %v364 = vsel %vm362, %v348, 0
        %366 = vmatprep.subr.bf16.mxu0 0
        %367 = vmatpush1.bf16.msra.mxu0 %v364
        %368 = vmatprep.subr.bf16.mxu0 0
        %369 = vmatpush1.bf16.msra.mxu0 0
        %370 = vmatprep.subr.bf16.mxu0 0
        %371 = vmatpush1.bf16.msra.mxu0 0
        %372 = vmatprep.subr.bf16.mxu0 0
        %373 = vmatpush1.bf16.msra.mxu0 0
        %374 = vmatprep.subr.bf16.mxu0 0
        %375 = vmatpush1.bf16.msra.mxu0 0
        %376 = vmatprep.subr.bf16.mxu0 0
        %377 = vmatpush1.bf16.msra.mxu0 0
        %378 = vmatprep.subr.bf16.mxu0 0
        %379 = vmatpush1.bf16.msra.mxu0 0
        %380 = vmatprep.subr.bf16.mxu0 0
        %381 = vmatpush1.bf16.msra.mxu0 0
        %382 = vmatprep.subr.bf16.mxu0 0
        %383 = vmatpush1.bf16.msra.mxu0 0
        %384 = vmatprep.subr.bf16.mxu0 0
        %385 = vmatpush1.bf16.msra.mxu0 0
        %386 = vmatprep.subr.bf16.mxu0 0
        %387 = vmatpush1.bf16.msra.mxu0 0
        %388 = vmatprep.subr.bf16.mxu0 0
        %389 = vmatpush1.bf16.msra.mxu0 0
        %390 = vmatprep.subr.bf16.mxu0 0
        %391 = vmatpush1.bf16.msra.mxu0 0
        %392 = vmatprep.subr.bf16.mxu0 0
        %393 = vmatpush1.bf16.msra.mxu0 0
        %394 = vmatprep.subr.bf16.mxu0 0
        %395 = vmatpush1.bf16.msra.mxu0 0
        %396 = vmatprep.subr.bf16.mxu0 0
        %397 = vmatpush1.bf16.msra.mxu0 0
        %398 = vmatprep.mubr.bf16.mxu0 0
        %399 = vmatmul.mubr.bf16.gmra.mrb[0].mxu0 %v351
        %v400 = vpop.f32.mrb[0].mxu0
        %v401 = vadd.f32 0.0, %v400
        %v402 = vpop.f32.mrb[0].mxu0
        %v403 = vpop.f32.mrb[0].mxu0
        %v404 = vadd.f32 0.0, %v403
        %v405 = vpop.f32.mrb[0].mxu0
        %406 = vmatprep.mubr.bf16.mxu0 0
        %407 = vmatmul.mubr.bf16.gmra.mrb[0].mxu0 %v354
        %v408 = vpop.f32.mrb[0].mxu0
        %v409 = vadd.f32 0.0, %v408
        %v410 = vpop.f32.mrb[0].mxu0
        %v411 = vpop.f32.mrb[0].mxu0
        %v412 = vadd.f32 0.0, %v411
        %v413 = vpop.f32.mrb[0].mxu0
        %414 = vmatprep.mubr.bf16.mxu0 0
        %415 = vmatmul.mubr.bf16.gmra.mrb[0].mxu0 %v357
        %v416 = vpop.f32.mrb[0].mxu0
        %v417 = vadd.f32 0.0, %v416
        %v418 = vpop.f32.mrb[0].mxu0
        %v419 = vpop.f32.mrb[0].mxu0
        %v420 = vadd.f32 0.0, %v419
        %v421 = vpop.f32.mrb[0].mxu0
        %422 = vmatprep.mubr.bf16.mxu0 0
        %423 = vmatmul.mubr.bf16.gmra.mrb[0].mxu0 %v360
        %v424 = vpop.f32.mrb[0].mxu0
        %v425 = vadd.f32 0.0, %v424
        %v426 = vpop.f32.mrb[0].mxu0
        %v427 = vpop.f32.mrb[0].mxu0
        %v428 = vadd.f32 0.0, %v427
        %v429 = vpop.f32.mrb[0].mxu0
        %430 = vdwg.mxu0
        %v432 = vunpack.c.l.b16 %v310
        %v433 = vpack.c.b16 %v332, %v432
        %v434 = vpack.c.b16 %v334, %v333
        %v435 = vpack.c.b16 %v336, %v335
        %v436 = vpack.c.b16 %v338, %v337
        %v439 = vunpack.c.l.b16 %v318
        %v440 = vunpack.c.l.b16 %v319
        %v441 = vpack.c.b16 %v440, %v439
        %v443 = vsel %vm349, %v433, 0
        %v446 = vsel %vm349, %v434, 0
        %v449 = vsel %vm349, %v435, 0
        %v452 = vsel %vm349, %v436, 0
        %v455 = vsel %vm362, %v441, 0
        %457 = vmatprep.subr.bf16.mxu0 0
        %458 = vmatpush1.bf16.msra.mxu0 %v455
        %459 = vmatprep.subr.bf16.mxu0 0
        %460 = vmatpush1.bf16.msra.mxu0 0
        %461 = vmatprep.subr.bf16.mxu0 0
        %462 = vmatpush1.bf16.msra.mxu0 0
        %463 = vmatprep.subr.bf16.mxu0 0
        %464 = vmatpush1.bf16.msra.mxu0 0
        %465 = vmatprep.subr.bf16.mxu0 0
        %466 = vmatpush1.bf16.msra.mxu0 0
        %467 = vmatprep.subr.bf16.mxu0 0
        %468 = vmatpush1.bf16.msra.mxu0 0
        %469 = vmatprep.subr.bf16.mxu0 0
        %470 = vmatpush1.bf16.msra.mxu0 0
        %471 = vmatprep.subr.bf16.mxu0 0
        %472 = vmatpush1.bf16.msra.mxu0 0
        %473 = vmatprep.subr.bf16.mxu0 0
        %474 = vmatpush1.bf16.msra.mxu0 0
        %475 = vmatprep.subr.bf16.mxu0 0
        %476 = vmatpush1.bf16.msra.mxu0 0
        %477 = vmatprep.subr.bf16.mxu0 0
        %478 = vmatpush1.bf16.msra.mxu0 0
        %479 = vmatprep.subr.bf16.mxu0 0
        %480 = vmatpush1.bf16.msra.mxu0 0
        %481 = vmatprep.subr.bf16.mxu0 0
        %482 = vmatpush1.bf16.msra.mxu0 0
        %483 = vmatprep.subr.bf16.mxu0 0
        %484 = vmatpush1.bf16.msra.mxu0 0
        %485 = vmatprep.subr.bf16.mxu0 0
        %486 = vmatpush1.bf16.msra.mxu0 0
        %487 = vmatprep.subr.bf16.mxu0 0
        %488 = vmatpush1.bf16.msra.mxu0 0
        %489 = vmatprep.mubr.bf16.mxu0 0
        %490 = vmatmul.mubr.bf16.gmra.mrb[0].mxu0 %v443
        %v491 = vpop.f32.mrb[0].mxu0
        %v492 = vadd.f32 %v401, %v491
        %v493 = vpop.f32.mrb[0].mxu0
        %v494 = vpop.f32.mrb[0].mxu0
        %v495 = vadd.f32 %v404, %v494
        %v496 = vpop.f32.mrb[0].mxu0
        %497 = vmatprep.mubr.bf16.mxu0 0
        %498 = vmatmul.mubr.bf16.gmra.mrb[0].mxu0 %v446
        %v499 = vpop.f32.mrb[0].mxu0
        %v500 = vadd.f32 %v409, %v499
        %v501 = vpop.f32.mrb[0].mxu0
        %v502 = vpop.f32.mrb[0].mxu0
        %v503 = vadd.f32 %v412, %v502
        %v504 = vpop.f32.mrb[0].mxu0
        %505 = vmatprep.mubr.bf16.mxu0 0
        %506 = vmatmul.mubr.bf16.gmra.mrb[0].mxu0 %v449
        %v507 = vpop.f32.mrb[0].mxu0
        %v508 = vadd.f32 %v417, %v507
        %v509 = vpop.f32.mrb[0].mxu0
        %v510 = vpop.f32.mrb[0].mxu0
        %v511 = vadd.f32 %v420, %v510
        %v512 = vpop.f32.mrb[0].mxu0
        %513 = vmatprep.mubr.bf16.mxu0 0
        %514 = vmatmul.mubr.bf16.gmra.mrb[0].mxu0 %v452
        %v515 = vpop.f32.mrb[0].mxu0
        %v516 = vadd.f32 %v425, %v515
        %v517 = vpop.f32.mrb[0].mxu0
        %v518 = vpop.f32.mrb[0].mxu0
        %v519 = vadd.f32 %v428, %v518
        %v520 = vpop.f32.mrb[0].mxu0
        %521 = vdwg.mxu0
        %v522 = vld [vmem:[%s281 + $0x8] sm:$0xf]
        %v523 = vld [vmem:[%s281 + $0xc] sm:$0xf]
        %v524 = vld [vmem:[%s281 + $0x10] sm:$0xf]
        %v525 = vld [vmem:[%s281 + $0x14] sm:$0xf]
        %v526 = vld [vmem:[%s281 + $0x18] sm:$0xf]
        %v527 = vld [vmem:[%s281 + $0x1c] sm:$0xf]
        %v528 = vld [vmem:[%s281 + $0x20] sm:$0xf]
        %v529 = vld [vmem:[%s281 + $0x24] sm:$0xf]
        %s530 = scalar_lea.vmem %s3, 16
        %v531 = vld [vmem:[%s530] sm:$0xf]
        %v532 = vld [vmem:[%s530 + $0x4] sm:$0x3]
        %v541 = vunpack.c.l.b16 %v522
        %v542 = vunpack.c.l.b16 %v523
        %v543 = vunpack.c.l.b16 %v524
        %v544 = vunpack.c.l.b16 %v525
        %v545 = vunpack.c.l.b16 %v526
        %v546 = vunpack.c.l.b16 %v527
        %v547 = vunpack.c.l.b16 %v528
        %v548 = vunpack.c.l.b16 %v529
        %v549 = vpack.c.b16 %v542, %v541
        %v550 = vpack.c.b16 %v544, %v543
        %v551 = vpack.c.b16 %v546, %v545
        %v552 = vpack.c.b16 %v548, %v547
        %v555 = vunpack.c.l.b16 %v531
        %v556 = vunpack.c.l.b16 %v532
        %v557 = vpack.c.b16 %v556, %v555
        %v559 = vsel %vm349, %v549, 0
        %v562 = vsel %vm349, %v550, 0
        %v565 = vsel %vm349, %v551, 0
        %v568 = vsel %vm349, %v552, 0
        %v571 = vsel %vm362, %v557, 0
        %573 = vmatprep.subr.bf16.mxu0 0
        %574 = vmatpush1.bf16.msra.mxu0 %v571
        %575 = vmatprep.subr.bf16.mxu0 0
        %576 = vmatpush1.bf16.msra.mxu0 0
        %577 = vmatprep.subr.bf16.mxu0 0
        %578 = vmatpush1.bf16.msra.mxu0 0
        %579 = vmatprep.subr.bf16.mxu0 0
        %580 = vmatpush1.bf16.msra.mxu0 0
        %581 = vmatprep.subr.bf16.mxu0 0
        %582 = vmatpush1.bf16.msra.mxu0 0
        %583 = vmatprep.subr.bf16.mxu0 0
        %584 = vmatpush1.bf16.msra.mxu0 0
        %585 = vmatprep.subr.bf16.mxu0 0
        %586 = vmatpush1.bf16.msra.mxu0 0
        %587 = vmatprep.subr.bf16.mxu0 0
        %588 = vmatpush1.bf16.msra.mxu0 0
        %589 = vmatprep.subr.bf16.mxu0 0
        %590 = vmatpush1.bf16.msra.mxu0 0
        %591 = vmatprep.subr.bf16.mxu0 0
        %592 = vmatpush1.bf16.msra.mxu0 0
        %593 = vmatprep.subr.bf16.mxu0 0
        %594 = vmatpush1.bf16.msra.mxu0 0
        %595 = vmatprep.subr.bf16.mxu0 0
        %596 = vmatpush1.bf16.msra.mxu0 0
        %597 = vmatprep.subr.bf16.mxu0 0
        %598 = vmatpush1.bf16.msra.mxu0 0
        %599 = vmatprep.subr.bf16.mxu0 0
        %600 = vmatpush1.bf16.msra.mxu0 0
        %601 = vmatprep.subr.bf16.mxu0 0
        %602 = vmatpush1.bf16.msra.mxu0 0
        %603 = vmatprep.subr.bf16.mxu0 0
        %604 = vmatpush1.bf16.msra.mxu0 0
        %605 = vmatprep.mubr.bf16.mxu0 0
        %606 = vmatmul.mubr.bf16.gmra.mrb[0].mxu0 %v559
        %v607 = vpop.f32.mrb[0].mxu0
        %v608 = vadd.f32 0.0, %v607
        %v609 = vpop.f32.mrb[0].mxu0
        %v610 = vpop.f32.mrb[0].mxu0
        %v611 = vadd.f32 0.0, %v610
        %v612 = vpop.f32.mrb[0].mxu0
        %613 = vmatprep.mubr.bf16.mxu0 0
        %614 = vmatmul.mubr.bf16.gmra.mrb[0].mxu0 %v562
        %v615 = vpop.f32.mrb[0].mxu0
        %v616 = vadd.f32 0.0, %v615
        %v617 = vpop.f32.mrb[0].mxu0
        %v618 = vpop.f32.mrb[0].mxu0
        %v619 = vadd.f32 0.0, %v618
        %v620 = vpop.f32.mrb[0].mxu0
        %621 = vmatprep.mubr.bf16.mxu0 0
        %622 = vmatmul.mubr.bf16.gmra.mrb[0].mxu0 %v565
        %v623 = vpop.f32.mrb[0].mxu0
        %v624 = vadd.f32 0.0, %v623
        %v625 = vpop.f32.mrb[0].mxu0
        %v626 = vpop.f32.mrb[0].mxu0
        %v627 = vadd.f32 0.0, %v626
        %v628 = vpop.f32.mrb[0].mxu0
        %629 = vmatprep.mubr.bf16.mxu0 0
        %630 = vmatmul.mubr.bf16.gmra.mrb[0].mxu0 %v568
        %v631 = vpop.f32.mrb[0].mxu0
        %v632 = vadd.f32 0.0, %v631
        %v633 = vpop.f32.mrb[0].mxu0
        %v634 = vpop.f32.mrb[0].mxu0
        %v635 = vadd.f32 0.0, %v634
        %v636 = vpop.f32.mrb[0].mxu0
        %637 = vdwg.mxu0
        %v638 = vadd.f32 %v492, %v608
        %v639 = vadd.f32 %v495, %v611
        %v640 = vadd.f32 %v500, %v616
        %v641 = vadd.f32 %v503, %v619
        %v642 = vadd.f32 %v508, %v624
        %v643 = vadd.f32 %v511, %v627
        %v644 = vadd.f32 %v516, %v632
        %v645 = vadd.f32 %v519, %v635
        %v646 = vld [vmem:[%s291] sm:$0xf]
        %v647 = vld [vmem:[%s291 + $0x4] sm:$0xf]
        %v648 = vld [vmem:[%s291 + $0x8] sm:$0xf]
        %v649 = vld [vmem:[%s291 + $0xc] sm:$0xf]
        %v650 = vld [vmem:[%s291 + $0x10] sm:$0xf]
        %v651 = vld [vmem:[%s291 + $0x14] sm:$0xf]
        %v652 = vld [vmem:[%s291 + $0x18] sm:$0xf]
        %v653 = vld [vmem:[%s291 + $0x1c] sm:$0xf]
        %s654 = scalar_lea.vmem %s3, 24
        %v655 = vld [vmem:[%s654] sm:$0xf]
        %v656 = vld [vmem:[%s654 + $0x4] sm:$0x3]
        %v665 = vunpack.c.l.b16 %v646
        %v666 = vunpack.c.l.b16 %v647
        %v667 = vunpack.c.l.b16 %v648
        %v668 = vunpack.c.l.b16 %v649
        %v669 = vunpack.c.l.b16 %v650
        %v670 = vunpack.c.l.b16 %v651
        %v671 = vunpack.c.l.b16 %v652
        %v672 = vunpack.c.l.b16 %v653
        %v673 = vpack.c.b16 %v666, %v665
        %v674 = vpack.c.b16 %v668, %v667
        %v675 = vpack.c.b16 %v670, %v669
        %v676 = vpack.c.b16 %v672, %v671
        %v679 = vunpack.c.l.b16 %v655
        %v680 = vunpack.c.l.b16 %v656
        %v681 = vpack.c.b16 %v680, %v679
        %v683 = vsel %vm349, %v673, 0
        %v686 = vsel %vm349, %v674, 0
        %v689 = vsel %vm349, %v675, 0
        %v692 = vsel %vm349, %v676, 0
        %v695 = vsel %vm362, %v681, 0
        %697 = vmatprep.subr.bf16.mxu0 0
        %698 = vmatpush1.bf16.msra.mxu0 %v695
        %699 = vmatprep.subr.bf16.mxu0 0
        %700 = vmatpush1.bf16.msra.mxu0 0
        %701 = vmatprep.subr.bf16.mxu0 0
        %702 = vmatpush1.bf16.msra.mxu0 0
        %703 = vmatprep.subr.bf16.mxu0 0
        %704 = vmatpush1.bf16.msra.mxu0 0
        %705 = vmatprep.subr.bf16.mxu0 0
        %706 = vmatpush1.bf16.msra.mxu0 0
        %707 = vmatprep.subr.bf16.mxu0 0
        %708 = vmatpush1.bf16.msra.mxu0 0
        %709 = vmatprep.subr.bf16.mxu0 0
        %710 = vmatpush1.bf16.msra.mxu0 0
        %711 = vmatprep.subr.bf16.mxu0 0
        %712 = vmatpush1.bf16.msra.mxu0 0
        %713 = vmatprep.subr.bf16.mxu0 0
        %714 = vmatpush1.bf16.msra.mxu0 0
        %715 = vmatprep.subr.bf16.mxu0 0
        %716 = vmatpush1.bf16.msra.mxu0 0
        %717 = vmatprep.subr.bf16.mxu0 0
        %718 = vmatpush1.bf16.msra.mxu0 0
        %719 = vmatprep.subr.bf16.mxu0 0
        %720 = vmatpush1.bf16.msra.mxu0 0
        %721 = vmatprep.subr.bf16.mxu0 0
        %722 = vmatpush1.bf16.msra.mxu0 0
        %723 = vmatprep.subr.bf16.mxu0 0
        %724 = vmatpush1.bf16.msra.mxu0 0
        %725 = vmatprep.subr.bf16.mxu0 0
        %726 = vmatpush1.bf16.msra.mxu0 0
        %727 = vmatprep.subr.bf16.mxu0 0
        %728 = vmatpush1.bf16.msra.mxu0 0
        %729 = vmatprep.mubr.bf16.mxu0 0
        %730 = vmatmul.mubr.bf16.gmra.mrb[0].mxu0 %v683
        %v731 = vpop.f32.mrb[0].mxu0
        %v732 = vadd.f32 0.0, %v731
        %v733 = vpop.f32.mrb[0].mxu0
        %v734 = vpop.f32.mrb[0].mxu0
        %v735 = vadd.f32 0.0, %v734
        %v736 = vpop.f32.mrb[0].mxu0
        %737 = vmatprep.mubr.bf16.mxu0 0
        %738 = vmatmul.mubr.bf16.gmra.mrb[0].mxu0 %v686
        %v739 = vpop.f32.mrb[0].mxu0
        %v740 = vadd.f32 0.0, %v739
        %v741 = vpop.f32.mrb[0].mxu0
        %v742 = vpop.f32.mrb[0].mxu0
        %v743 = vadd.f32 0.0, %v742
        %v744 = vpop.f32.mrb[0].mxu0
        %745 = vmatprep.mubr.bf16.mxu0 0
        %746 = vmatmul.mubr.bf16.gmra.mrb[0].mxu0 %v689
        %v747 = vpop.f32.mrb[0].mxu0
        %v748 = vadd.f32 0.0, %v747
        %v749 = vpop.f32.mrb[0].mxu0
        %v750 = vpop.f32.mrb[0].mxu0
        %v751 = vadd.f32 0.0, %v750
        %v752 = vpop.f32.mrb[0].mxu0
        %753 = vmatprep.mubr.bf16.mxu0 0
        %754 = vmatmul.mubr.bf16.gmra.mrb[0].mxu0 %v692
        %v755 = vpop.f32.mrb[0].mxu0
        %v756 = vadd.f32 0.0, %v755
        %v757 = vpop.f32.mrb[0].mxu0
        %v758 = vpop.f32.mrb[0].mxu0
        %v759 = vadd.f32 0.0, %v758
        %v760 = vpop.f32.mrb[0].mxu0
        %761 = vdwg.mxu0
        %v762 = vadd.f32 %v638, %v732
        %v763 = vadd.f32 %v639, %v735
        %v764 = vadd.f32 %v640, %v740
        %v765 = vadd.f32 %v641, %v743
        %v766 = vadd.f32 %v642, %v748
        %v767 = vadd.f32 %v643, %v751
        %v768 = vadd.f32 %v644, %v756
        %v769 = vadd.f32 %v645, %v759
        %v770 = vld [vmem:[%s291 + $0x4] sm:$0xf]
        %v771 = vld [vmem:[%s291 + $0x8] sm:$0xf]
        %v772 = vld [vmem:[%s291 + $0xc] sm:$0xf]
        %v773 = vld [vmem:[%s291 + $0x10] sm:$0xf]
        %v774 = vld [vmem:[%s291 + $0x14] sm:$0xf]
        %v775 = vld [vmem:[%s291 + $0x18] sm:$0xf]
        %v776 = vld [vmem:[%s291 + $0x1c] sm:$0xf]
        %v777 = vld [vmem:[%s291 + $0x20] sm:$0xf]
        %s778 = scalar_lea.vmem %s3, 32
        %v779 = vld [vmem:[%s778] sm:$0xf]
        %v780 = vld [vmem:[%s778 + $0x4] sm:$0x3]
        %v789 = vunpack.c.l.b16 %v770
        %v790 = vunpack.c.l.b16 %v771
        %v791 = vunpack.c.l.b16 %v772
        %v792 = vunpack.c.l.b16 %v773
        %v793 = vunpack.c.l.b16 %v774
        %v794 = vunpack.c.l.b16 %v775
        %v795 = vunpack.c.l.b16 %v776
        %v796 = vunpack.c.l.b16 %v777
        %v797 = vpack.c.b16 %v790, %v789
        %v798 = vpack.c.b16 %v792, %v791
        %v799 = vpack.c.b16 %v794, %v793
        %v800 = vpack.c.b16 %v796, %v795
        %v803 = vunpack.c.l.b16 %v779
        %v804 = vunpack.c.l.b16 %v780
        %v805 = vpack.c.b16 %v804, %v803
        %v807 = vsel %vm349, %v797, 0
        %v810 = vsel %vm349, %v798, 0
        %v813 = vsel %vm349, %v799, 0
        %v816 = vsel %vm349, %v800, 0
        %v819 = vsel %vm362, %v805, 0
        %821 = vmatprep.subr.bf16.mxu0 0
        %822 = vmatpush1.bf16.msra.mxu0 %v819
        %823 = vmatprep.subr.bf16.mxu0 0
        %824 = vmatpush1.bf16.msra.mxu0 0
        %825 = vmatprep.subr.bf16.mxu0 0
        %826 = vmatpush1.bf16.msra.mxu0 0
        %827 = vmatprep.subr.bf16.mxu0 0
        %828 = vmatpush1.bf16.msra.mxu0 0
        %829 = vmatprep.subr.bf16.mxu0 0
        %830 = vmatpush1.bf16.msra.mxu0 0
        %831 = vmatprep.subr.bf16.mxu0 0
        %832 = vmatpush1.bf16.msra.mxu0 0
        %833 = vmatprep.subr.bf16.mxu0 0
        %834 = vmatpush1.bf16.msra.mxu0 0
        %835 = vmatprep.subr.bf16.mxu0 0
        %836 = vmatpush1.bf16.msra.mxu0 0
        %837 = vmatprep.subr.bf16.mxu0 0
        %838 = vmatpush1.bf16.msra.mxu0 0
        %839 = vmatprep.subr.bf16.mxu0 0
        %840 = vmatpush1.bf16.msra.mxu0 0
        %841 = vmatprep.subr.bf16.mxu0 0
        %842 = vmatpush1.bf16.msra.mxu0 0
        %843 = vmatprep.subr.bf16.mxu0 0
        %844 = vmatpush1.bf16.msra.mxu0 0
        %845 = vmatprep.subr.bf16.mxu0 0
        %846 = vmatpush1.bf16.msra.mxu0 0
        %847 = vmatprep.subr.bf16.mxu0 0
        %848 = vmatpush1.bf16.msra.mxu0 0
        %849 = vmatprep.subr.bf16.mxu0 0
        %850 = vmatpush1.bf16.msra.mxu0 0
        %851 = vmatprep.subr.bf16.mxu0 0
        %852 = vmatpush1.bf16.msra.mxu0 0
        %853 = vmatprep.mubr.bf16.mxu0 0
        %854 = vmatmul.mubr.bf16.gmra.mrb[0].mxu0 %v807
        %v855 = vpop.f32.mrb[0].mxu0
        %v856 = vadd.f32 0.0, %v855
        %v857 = vpop.f32.mrb[0].mxu0
        %v858 = vpop.f32.mrb[0].mxu0
        %v859 = vadd.f32 0.0, %v858
        %v860 = vpop.f32.mrb[0].mxu0
        %861 = vmatprep.mubr.bf16.mxu0 0
        %862 = vmatmul.mubr.bf16.gmra.mrb[0].mxu0 %v810
        %v863 = vpop.f32.mrb[0].mxu0
        %v864 = vadd.f32 0.0, %v863
        %v865 = vpop.f32.mrb[0].mxu0
        %v866 = vpop.f32.mrb[0].mxu0
        %v867 = vadd.f32 0.0, %v866
        %v868 = vpop.f32.mrb[0].mxu0
        %869 = vmatprep.mubr.bf16.mxu0 0
        %870 = vmatmul.mubr.bf16.gmra.mrb[0].mxu0 %v813
        %v871 = vpop.f32.mrb[0].mxu0
        %v872 = vadd.f32 0.0, %v871
        %v873 = vpop.f32.mrb[0].mxu0
        %v874 = vpop.f32.mrb[0].mxu0
        %v875 = vadd.f32 0.0, %v874
        %v876 = vpop.f32.mrb[0].mxu0
        %877 = vmatprep.mubr.bf16.mxu0 0
        %878 = vmatmul.mubr.bf16.gmra.mrb[0].mxu0 %v816
        %v879 = vpop.f32.mrb[0].mxu0
        %v880 = vadd.f32 0.0, %v879
        %v881 = vpop.f32.mrb[0].mxu0
        %v882 = vpop.f32.mrb[0].mxu0
        %v883 = vadd.f32 0.0, %v882
        %v884 = vpop.f32.mrb[0].mxu0
        %885 = vdwg.mxu0
        %v886 = vadd.f32 %v762, %v856
        %v887 = vadd.f32 %v763, %v859
        %v888 = vadd.f32 %v764, %v864
        %v889 = vadd.f32 %v765, %v867
        %v890 = vadd.f32 %v766, %v872
        %v891 = vadd.f32 %v767, %v875
        %v892 = vadd.f32 %v768, %v880
        %v893 = vadd.f32 %v769, %v883
        %v894 = vld [vmem:[%s291 + $0x8] sm:$0xf]
        %v895 = vld [vmem:[%s291 + $0xc] sm:$0xf]
        %v896 = vld [vmem:[%s291 + $0x10] sm:$0xf]
        %v897 = vld [vmem:[%s291 + $0x14] sm:$0xf]
        %v898 = vld [vmem:[%s291 + $0x18] sm:$0xf]
        %v899 = vld [vmem:[%s291 + $0x1c] sm:$0xf]
        %v900 = vld [vmem:[%s291 + $0x20] sm:$0xf]
        %v901 = vld [vmem:[%s291 + $0x24] sm:$0xf]
        %s902 = scalar_lea.vmem %s3, 40
        %v903 = vld [vmem:[%s902] sm:$0xf]
        %v904 = vld [vmem:[%s902 + $0x4] sm:$0x3]
        %v913 = vunpack.c.l.b16 %v894
        %v914 = vunpack.c.l.b16 %v895
        %v915 = vunpack.c.l.b16 %v896
        %v916 = vunpack.c.l.b16 %v897
        %v917 = vunpack.c.l.b16 %v898
        %v918 = vunpack.c.l.b16 %v899
        %v919 = vunpack.c.l.b16 %v900
        %v920 = vunpack.c.l.b16 %v901
        %v921 = vpack.c.b16 %v914, %v913
        %v922 = vpack.c.b16 %v916, %v915
        %v923 = vpack.c.b16 %v918, %v917
        %v924 = vpack.c.b16 %v920, %v919
        %v927 = vunpack.c.l.b16 %v903
        %v928 = vunpack.c.l.b16 %v904
        %v929 = vpack.c.b16 %v928, %v927
        %v931 = vsel %vm349, %v921, 0
        %v934 = vsel %vm349, %v922, 0
        %v937 = vsel %vm349, %v923, 0
        %v940 = vsel %vm349, %v924, 0
        %v943 = vsel %vm362, %v929, 0
        %945 = vmatprep.subr.bf16.mxu0 0
        %946 = vmatpush1.bf16.msra.mxu0 %v943
        %947 = vmatprep.subr.bf16.mxu0 0
        %948 = vmatpush1.bf16.msra.mxu0 0
        %949 = vmatprep.subr.bf16.mxu0 0
        %950 = vmatpush1.bf16.msra.mxu0 0
        %951 = vmatprep.subr.bf16.mxu0 0
        %952 = vmatpush1.bf16.msra.mxu0 0
        %953 = vmatprep.subr.bf16.mxu0 0
        %954 = vmatpush1.bf16.msra.mxu0 0
        %955 = vmatprep.subr.bf16.mxu0 0
        %956 = vmatpush1.bf16.msra.mxu0 0
        %957 = vmatprep.subr.bf16.mxu0 0
        %958 = vmatpush1.bf16.msra.mxu0 0
        %959 = vmatprep.subr.bf16.mxu0 0
        %960 = vmatpush1.bf16.msra.mxu0 0
        %961 = vmatprep.subr.bf16.mxu0 0
        %962 = vmatpush1.bf16.msra.mxu0 0
        %963 = vmatprep.subr.bf16.mxu0 0
        %964 = vmatpush1.bf16.msra.mxu0 0
        %965 = vmatprep.subr.bf16.mxu0 0
        %966 = vmatpush1.bf16.msra.mxu0 0
        %967 = vmatprep.subr.bf16.mxu0 0
        %968 = vmatpush1.bf16.msra.mxu0 0
        %969 = vmatprep.subr.bf16.mxu0 0
        %970 = vmatpush1.bf16.msra.mxu0 0
        %971 = vmatprep.subr.bf16.mxu0 0
        %972 = vmatpush1.bf16.msra.mxu0 0
        %973 = vmatprep.subr.bf16.mxu0 0
        %974 = vmatpush1.bf16.msra.mxu0 0
        %975 = vmatprep.subr.bf16.mxu0 0
        %976 = vmatpush1.bf16.msra.mxu0 0
        %977 = vmatprep.mubr.bf16.mxu0 0
        %978 = vmatmul.mubr.bf16.gmra.mrb[0].mxu0 %v931
        %v979 = vpop.f32.mrb[0].mxu0
        %v980 = vadd.f32 0.0, %v979
        %v981 = vpop.f32.mrb[0].mxu0
        %v982 = vpop.f32.mrb[0].mxu0
        %v983 = vadd.f32 0.0, %v982
        %v984 = vpop.f32.mrb[0].mxu0
        %985 = vmatprep.mubr.bf16.mxu0 0
        %986 = vmatmul.mubr.bf16.gmra.mrb[0].mxu0 %v934
        %v987 = vpop.f32.mrb[0].mxu0
        %v988 = vadd.f32 0.0, %v987
        %v989 = vpop.f32.mrb[0].mxu0
        %v990 = vpop.f32.mrb[0].mxu0
        %v991 = vadd.f32 0.0, %v990
        %v992 = vpop.f32.mrb[0].mxu0
        %993 = vmatprep.mubr.bf16.mxu0 0
        %994 = vmatmul.mubr.bf16.gmra.mrb[0].mxu0 %v937
        %v995 = vpop.f32.mrb[0].mxu0
        %v996 = vadd.f32 0.0, %v995
        %v997 = vpop.f32.mrb[0].mxu0
        %v998 = vpop.f32.mrb[0].mxu0
        %v999 = vadd.f32 0.0, %v998
        %v1000 = vpop.f32.mrb[0].mxu0
        %1001 = vmatprep.mubr.bf16.mxu0 0
        %1002 = vmatmul.mubr.bf16.gmra.mrb[0].mxu0 %v940
        %v1003 = vpop.f32.mrb[0].mxu0
        %v1004 = vadd.f32 0.0, %v1003
        %v1005 = vpop.f32.mrb[0].mxu0
        %v1006 = vpop.f32.mrb[0].mxu0
        %v1007 = vadd.f32 0.0, %v1006
        %v1008 = vpop.f32.mrb[0].mxu0
        %1009 = vdwg.mxu0
        %v1010 = vadd.f32 %v886, %v980
        %v1011 = vadd.f32 %v887, %v983
        %v1012 = vadd.f32 %v888, %v988
        %v1013 = vadd.f32 %v889, %v991
        %v1014 = vadd.f32 %v890, %v996
        %v1015 = vadd.f32 %v891, %v999
        %v1016 = vadd.f32 %v892, %v1004
        %v1017 = vadd.f32 %v893, %v1007
        %v1018 = vld [vmem:[%s302] sm:$0xf]
        %v1019 = vld [vmem:[%s302 + $0x4] sm:$0xf]
        %v1020 = vld [vmem:[%s302 + $0x8] sm:$0xf]
        %v1021 = vld [vmem:[%s302 + $0xc] sm:$0xf]
        %v1022 = vld [vmem:[%s302 + $0x10] sm:$0xf]
        %v1023 = vld [vmem:[%s302 + $0x14] sm:$0xf]
        %v1024 = vld [vmem:[%s302 + $0x18] sm:$0xf]
        %v1025 = vld [vmem:[%s302 + $0x1c] sm:$0xf]
        %s1026 = scalar_lea.vmem %s3, 48
        %v1027 = vld [vmem:[%s1026] sm:$0xf]
        %v1028 = vld [vmem:[%s1026 + $0x4] sm:$0x3]
        %v1037 = vunpack.c.l.b16 %v1018
        %v1038 = vunpack.c.l.b16 %v1019
        %v1039 = vunpack.c.l.b16 %v1020
        %v1040 = vunpack.c.l.b16 %v1021
        %v1041 = vunpack.c.l.b16 %v1022
        %v1042 = vunpack.c.l.b16 %v1023
        %v1043 = vunpack.c.l.b16 %v1024
        %v1044 = vunpack.c.l.b16 %v1025
        %v1045 = vpack.c.b16 %v1038, %v1037
        %v1046 = vpack.c.b16 %v1040, %v1039
        %v1047 = vpack.c.b16 %v1042, %v1041
        %v1048 = vpack.c.b16 %v1044, %v1043
        %v1051 = vunpack.c.l.b16 %v1027
        %v1052 = vunpack.c.l.b16 %v1028
        %v1053 = vpack.c.b16 %v1052, %v1051
        %v1055 = vsel %vm349, %v1045, 0
        %v1058 = vsel %vm349, %v1046, 0
        %v1061 = vsel %vm349, %v1047, 0
        %v1064 = vsel %vm349, %v1048, 0
        %v1067 = vsel %vm362, %v1053, 0
        %1069 = vmatprep.subr.bf16.mxu0 0
        %1070 = vmatpush1.bf16.msra.mxu0 %v1067
        %1071 = vmatprep.subr.bf16.mxu0 0
        %1072 = vmatpush1.bf16.msra.mxu0 0
        %1073 = vmatprep.subr.bf16.mxu0 0
        %1074 = vmatpush1.bf16.msra.mxu0 0
        %1075 = vmatprep.subr.bf16.mxu0 0
        %1076 = vmatpush1.bf16.msra.mxu0 0
        %1077 = vmatprep.subr.bf16.mxu0 0
        %1078 = vmatpush1.bf16.msra.mxu0 0
        %1079 = vmatprep.subr.bf16.mxu0 0
        %1080 = vmatpush1.bf16.msra.mxu0 0
        %1081 = vmatprep.subr.bf16.mxu0 0
        %1082 = vmatpush1.bf16.msra.mxu0 0
        %1083 = vmatprep.subr.bf16.mxu0 0
        %1084 = vmatpush1.bf16.msra.mxu0 0
        %1085 = vmatprep.subr.bf16.mxu0 0
        %1086 = vmatpush1.bf16.msra.mxu0 0
        %1087 = vmatprep.subr.bf16.mxu0 0
        %1088 = vmatpush1.bf16.msra.mxu0 0
        %1089 = vmatprep.subr.bf16.mxu0 0
        %1090 = vmatpush1.bf16.msra.mxu0 0
        %1091 = vmatprep.subr.bf16.mxu0 0
        %1092 = vmatpush1.bf16.msra.mxu0 0
        %1093 = vmatprep.subr.bf16.mxu0 0
        %1094 = vmatpush1.bf16.msra.mxu0 0
        %1095 = vmatprep.subr.bf16.mxu0 0
        %1096 = vmatpush1.bf16.msra.mxu0 0
        %1097 = vmatprep.subr.bf16.mxu0 0
        %1098 = vmatpush1.bf16.msra.mxu0 0
        %1099 = vmatprep.subr.bf16.mxu0 0
        %1100 = vmatpush1.bf16.msra.mxu0 0
        %1101 = vmatprep.mubr.bf16.mxu0 0
        %1102 = vmatmul.mubr.bf16.gmra.mrb[0].mxu0 %v1055
        %v1103 = vpop.f32.mrb[0].mxu0
        %v1104 = vadd.f32 0.0, %v1103
        %v1105 = vpop.f32.mrb[0].mxu0
        %v1106 = vpop.f32.mrb[0].mxu0
        %v1107 = vadd.f32 0.0, %v1106
        %v1108 = vpop.f32.mrb[0].mxu0
        %1109 = vmatprep.mubr.bf16.mxu0 0
        %1110 = vmatmul.mubr.bf16.gmra.mrb[0].mxu0 %v1058
        %v1111 = vpop.f32.mrb[0].mxu0
        %v1112 = vadd.f32 0.0, %v1111
        %v1113 = vpop.f32.mrb[0].mxu0
        %v1114 = vpop.f32.mrb[0].mxu0
        %v1115 = vadd.f32 0.0, %v1114
        %v1116 = vpop.f32.mrb[0].mxu0
        %1117 = vmatprep.mubr.bf16.mxu0 0
        %1118 = vmatmul.mubr.bf16.gmra.mrb[0].mxu0 %v1061
        %v1119 = vpop.f32.mrb[0].mxu0
        %v1120 = vadd.f32 0.0, %v1119
        %v1121 = vpop.f32.mrb[0].mxu0
        %v1122 = vpop.f32.mrb[0].mxu0
        %v1123 = vadd.f32 0.0, %v1122
        %v1124 = vpop.f32.mrb[0].mxu0
        %1125 = vmatprep.mubr.bf16.mxu0 0
        %1126 = vmatmul.mubr.bf16.gmra.mrb[0].mxu0 %v1064
        %v1127 = vpop.f32.mrb[0].mxu0
        %v1128 = vadd.f32 0.0, %v1127
        %v1129 = vpop.f32.mrb[0].mxu0
        %v1130 = vpop.f32.mrb[0].mxu0
        %v1131 = vadd.f32 0.0, %v1130
        %v1132 = vpop.f32.mrb[0].mxu0
        %1133 = vdwg.mxu0
        %v1134 = vadd.f32 %v1010, %v1104
        %v1135 = vadd.f32 %v1011, %v1107
        %v1136 = vadd.f32 %v1012, %v1112
        %v1137 = vadd.f32 %v1013, %v1115
        %v1138 = vadd.f32 %v1014, %v1120
        %v1139 = vadd.f32 %v1015, %v1123
        %v1140 = vadd.f32 %v1016, %v1128
        %v1141 = vadd.f32 %v1017, %v1131
        %v1142 = vld [vmem:[%s302 + $0x4] sm:$0xf]
        %v1143 = vld [vmem:[%s302 + $0x8] sm:$0xf]
        %v1144 = vld [vmem:[%s302 + $0xc] sm:$0xf]
        %v1145 = vld [vmem:[%s302 + $0x10] sm:$0xf]
        %v1146 = vld [vmem:[%s302 + $0x14] sm:$0xf]
        %v1147 = vld [vmem:[%s302 + $0x18] sm:$0xf]
        %v1148 = vld [vmem:[%s302 + $0x1c] sm:$0xf]
        %v1149 = vld [vmem:[%s302 + $0x20] sm:$0xf]
        %s1150 = scalar_lea.vmem %s3, 56
        %v1151 = vld [vmem:[%s1150] sm:$0xf]
        %v1152 = vld [vmem:[%s1150 + $0x4] sm:$0x3]
        %v1161 = vunpack.c.l.b16 %v1142
        %v1162 = vunpack.c.l.b16 %v1143
        %v1163 = vunpack.c.l.b16 %v1144
        %v1164 = vunpack.c.l.b16 %v1145
        %v1165 = vunpack.c.l.b16 %v1146
        %v1166 = vunpack.c.l.b16 %v1147
        %v1167 = vunpack.c.l.b16 %v1148
        %v1168 = vunpack.c.l.b16 %v1149
        %v1169 = vpack.c.b16 %v1162, %v1161
        %v1170 = vpack.c.b16 %v1164, %v1163
        %v1171 = vpack.c.b16 %v1166, %v1165
        %v1172 = vpack.c.b16 %v1168, %v1167
        %v1175 = vunpack.c.l.b16 %v1151
        %v1176 = vunpack.c.l.b16 %v1152
        %v1177 = vpack.c.b16 %v1176, %v1175
        %v1179 = vsel %vm349, %v1169, 0
        %v1182 = vsel %vm349, %v1170, 0
        %v1185 = vsel %vm349, %v1171, 0
        %v1188 = vsel %vm349, %v1172, 0
        %v1191 = vsel %vm362, %v1177, 0
        %1193 = vmatprep.subr.bf16.mxu0 0
        %1194 = vmatpush1.bf16.msra.mxu0 %v1191
        %1195 = vmatprep.subr.bf16.mxu0 0
        %1196 = vmatpush1.bf16.msra.mxu0 0
        %1197 = vmatprep.subr.bf16.mxu0 0
        %1198 = vmatpush1.bf16.msra.mxu0 0
        %1199 = vmatprep.subr.bf16.mxu0 0
        %1200 = vmatpush1.bf16.msra.mxu0 0
        %1201 = vmatprep.subr.bf16.mxu0 0
        %1202 = vmatpush1.bf16.msra.mxu0 0
        %1203 = vmatprep.subr.bf16.mxu0 0
        %1204 = vmatpush1.bf16.msra.mxu0 0
        %1205 = vmatprep.subr.bf16.mxu0 0
        %1206 = vmatpush1.bf16.msra.mxu0 0
        %1207 = vmatprep.subr.bf16.mxu0 0
        %1208 = vmatpush1.bf16.msra.mxu0 0
        %1209 = vmatprep.subr.bf16.mxu0 0
        %1210 = vmatpush1.bf16.msra.mxu0 0
        %1211 = vmatprep.subr.bf16.mxu0 0
        %1212 = vmatpush1.bf16.msra.mxu0 0
        %1213 = vmatprep.subr.bf16.mxu0 0
        %1214 = vmatpush1.bf16.msra.mxu0 0
        %1215 = vmatprep.subr.bf16.mxu0 0
        %1216 = vmatpush1.bf16.msra.mxu0 0
        %1217 = vmatprep.subr.bf16.mxu0 0
        %1218 = vmatpush1.bf16.msra.mxu0 0
        %1219 = vmatprep.subr.bf16.mxu0 0
        %1220 = vmatpush1.bf16.msra.mxu0 0
        %1221 = vmatprep.subr.bf16.mxu0 0
        %1222 = vmatpush1.bf16.msra.mxu0 0
        %1223 = vmatprep.subr.bf16.mxu0 0
        %1224 = vmatpush1.bf16.msra.mxu0 0
        %1225 = vmatprep.mubr.bf16.mxu0 0
        %1226 = vmatmul.mubr.bf16.gmra.mrb[0].mxu0 %v1179
        %v1227 = vpop.f32.mrb[0].mxu0
        %v1228 = vadd.f32 0.0, %v1227
        %v1229 = vpop.f32.mrb[0].mxu0
        %v1230 = vpop.f32.mrb[0].mxu0
        %v1231 = vadd.f32 0.0, %v1230
        %v1232 = vpop.f32.mrb[0].mxu0
        %1233 = vmatprep.mubr.bf16.mxu0 0
        %1234 = vmatmul.mubr.bf16.gmra.mrb[0].mxu0 %v1182
        %v1235 = vpop.f32.mrb[0].mxu0
        %v1236 = vadd.f32 0.0, %v1235
        %v1237 = vpop.f32.mrb[0].mxu0
        %v1238 = vpop.f32.mrb[0].mxu0
        %v1239 = vadd.f32 0.0, %v1238
        %v1240 = vpop.f32.mrb[0].mxu0
        %1241 = vmatprep.mubr.bf16.mxu0 0
        %1242 = vmatmul.mubr.bf16.gmra.mrb[0].mxu0 %v1185
        %v1243 = vpop.f32.mrb[0].mxu0
        %v1244 = vadd.f32 0.0, %v1243
        %v1245 = vpop.f32.mrb[0].mxu0
        %v1246 = vpop.f32.mrb[0].mxu0
        %v1247 = vadd.f32 0.0, %v1246
        %v1248 = vpop.f32.mrb[0].mxu0
        %1249 = vmatprep.mubr.bf16.mxu0 0
        %1250 = vmatmul.mubr.bf16.gmra.mrb[0].mxu0 %v1188
        %v1251 = vpop.f32.mrb[0].mxu0
        %v1252 = vadd.f32 0.0, %v1251
        %v1253 = vpop.f32.mrb[0].mxu0
        %v1254 = vpop.f32.mrb[0].mxu0
        %v1255 = vadd.f32 0.0, %v1254
        %v1256 = vpop.f32.mrb[0].mxu0
        %1257 = vdwg.mxu0
        %v1258 = vadd.f32 %v1134, %v1228
        %v1259 = vadd.f32 %v1135, %v1231
        %v1260 = vadd.f32 %v1136, %v1236
        %v1261 = vadd.f32 %v1137, %v1239
        %v1262 = vadd.f32 %v1138, %v1244
        %v1263 = vadd.f32 %v1139, %v1247
        %v1264 = vadd.f32 %v1140, %v1252
        %v1265 = vadd.f32 %v1141, %v1255
        %v1266 = vld [vmem:[%s302 + $0x8] sm:$0xf]
        %v1267 = vld [vmem:[%s302 + $0xc] sm:$0xf]
        %v1268 = vld [vmem:[%s302 + $0x10] sm:$0xf]
        %v1269 = vld [vmem:[%s302 + $0x14] sm:$0xf]
        %v1270 = vld [vmem:[%s302 + $0x18] sm:$0xf]
        %v1271 = vld [vmem:[%s302 + $0x1c] sm:$0xf]
        %v1272 = vld [vmem:[%s302 + $0x20] sm:$0xf]
        %v1273 = vld [vmem:[%s302 + $0x24] sm:$0xf]
        %s1274 = scalar_lea.vmem %s3, 64
        %v1275 = vld [vmem:[%s1274] sm:$0xf]
        %v1276 = vld [vmem:[%s1274 + $0x4] sm:$0x3]
        %v1285 = vunpack.c.l.b16 %v1266
        %v1286 = vunpack.c.l.b16 %v1267
        %v1287 = vunpack.c.l.b16 %v1268
        %v1288 = vunpack.c.l.b16 %v1269
        %v1289 = vunpack.c.l.b16 %v1270
        %v1290 = vunpack.c.l.b16 %v1271
        %v1291 = vunpack.c.l.b16 %v1272
        %v1292 = vunpack.c.l.b16 %v1273
        %v1293 = vpack.c.b16 %v1286, %v1285
        %v1294 = vpack.c.b16 %v1288, %v1287
        %v1295 = vpack.c.b16 %v1290, %v1289
        %v1296 = vpack.c.b16 %v1292, %v1291
        %v1299 = vunpack.c.l.b16 %v1275
        %v1300 = vunpack.c.l.b16 %v1276
        %v1301 = vpack.c.b16 %v1300, %v1299
        %v1303 = vsel %vm349, %v1293, 0
        %v1306 = vsel %vm349, %v1294, 0
        %v1309 = vsel %vm349, %v1295, 0
        %v1312 = vsel %vm349, %v1296, 0
        %v1315 = vsel %vm362, %v1301, 0
        %1317 = vmatprep.subr.bf16.mxu0 0
        %1318 = vmatpush1.bf16.msra.mxu0 %v1315
        %1319 = vmatprep.subr.bf16.mxu0 0
        %1320 = vmatpush1.bf16.msra.mxu0 0
        %1321 = vmatprep.subr.bf16.mxu0 0
        %1322 = vmatpush1.bf16.msra.mxu0 0
        %1323 = vmatprep.subr.bf16.mxu0 0
        %1324 = vmatpush1.bf16.msra.mxu0 0
        %1325 = vmatprep.subr.bf16.mxu0 0
        %1326 = vmatpush1.bf16.msra.mxu0 0
        %1327 = vmatprep.subr.bf16.mxu0 0
        %1328 = vmatpush1.bf16.msra.mxu0 0
        %1329 = vmatprep.subr.bf16.mxu0 0
        %1330 = vmatpush1.bf16.msra.mxu0 0
        %1331 = vmatprep.subr.bf16.mxu0 0
        %1332 = vmatpush1.bf16.msra.mxu0 0
        %1333 = vmatprep.subr.bf16.mxu0 0
        %1334 = vmatpush1.bf16.msra.mxu0 0
        %1335 = vmatprep.subr.bf16.mxu0 0
        %1336 = vmatpush1.bf16.msra.mxu0 0
        %1337 = vmatprep.subr.bf16.mxu0 0
        %1338 = vmatpush1.bf16.msra.mxu0 0
        %1339 = vmatprep.subr.bf16.mxu0 0
        %1340 = vmatpush1.bf16.msra.mxu0 0
        %1341 = vmatprep.subr.bf16.mxu0 0
        %1342 = vmatpush1.bf16.msra.mxu0 0
        %1343 = vmatprep.subr.bf16.mxu0 0
        %1344 = vmatpush1.bf16.msra.mxu0 0
        %1345 = vmatprep.subr.bf16.mxu0 0
        %1346 = vmatpush1.bf16.msra.mxu0 0
        %1347 = vmatprep.subr.bf16.mxu0 0
        %1348 = vmatpush1.bf16.msra.mxu0 0
        %1349 = vmatprep.mubr.bf16.mxu0 0
        %1350 = vmatmul.mubr.bf16.gmra.mrb[0].mxu0 %v1303
        %v1351 = vpop.f32.mrb[0].mxu0
        %v1352 = vadd.f32 0.0, %v1351
        %v1353 = vpop.f32.mrb[0].mxu0
        %v1354 = vpop.f32.mrb[0].mxu0
        %v1355 = vadd.f32 0.0, %v1354
        %v1356 = vpop.f32.mrb[0].mxu0
        %1357 = vmatprep.mubr.bf16.mxu0 0
        %1358 = vmatmul.mubr.bf16.gmra.mrb[0].mxu0 %v1306
        %v1359 = vpop.f32.mrb[0].mxu0
        %v1360 = vadd.f32 0.0, %v1359
        %v1361 = vpop.f32.mrb[0].mxu0
        %v1362 = vpop.f32.mrb[0].mxu0
        %v1363 = vadd.f32 0.0, %v1362
        %v1364 = vpop.f32.mrb[0].mxu0
        %1365 = vmatprep.mubr.bf16.mxu0 0
        %1366 = vmatmul.mubr.bf16.gmra.mrb[0].mxu0 %v1309
        %v1367 = vpop.f32.mrb[0].mxu0
        %v1368 = vadd.f32 0.0, %v1367
        %v1369 = vpop.f32.mrb[0].mxu0
        %v1370 = vpop.f32.mrb[0].mxu0
        %v1371 = vadd.f32 0.0, %v1370
        %v1372 = vpop.f32.mrb[0].mxu0
        %1373 = vmatprep.mubr.bf16.mxu0 0
        %1374 = vmatmul.mubr.bf16.gmra.mrb[0].mxu0 %v1312
        %v1375 = vpop.f32.mrb[0].mxu0
        %v1376 = vadd.f32 0.0, %v1375
        %v1377 = vpop.f32.mrb[0].mxu0
        %v1378 = vpop.f32.mrb[0].mxu0
        %v1379 = vadd.f32 0.0, %v1378
        %v1380 = vpop.f32.mrb[0].mxu0
        %1381 = vdwg.mxu0
        %v1382 = vadd.f32 %v1258, %v1352
        %v1383 = vadd.f32 %v1259, %v1355
        %v1384 = vadd.f32 %v1260, %v1360
        %v1385 = vadd.f32 %v1261, %v1363
        %v1386 = vadd.f32 %v1262, %v1368
        %v1387 = vadd.f32 %v1263, %v1371
        %v1388 = vadd.f32 %v1264, %v1376
        %v1389 = vadd.f32 %v1265, %v1379
        %v1390 = vadd.f32 %v1382, %v1383
        %v1391 = vadd.f32 %v1390, %v1384
        %v1392 = vadd.f32 %v1391, %v1385
        %v1393 = vadd.f32 %v1392, %v1386
        %v1394 = vadd.f32 %v1393, %v1387
        %v1395 = vadd.f32 %v1394, %v1388
        %v1396 = vadd.f32 %v1395, %v1389
        %v1397 = vrot.slane %v1396, 4
        %v1398 = vadd.f32 %v1396, %v1397
        %v1399 = vrot.slane %v1398, 2
        %v1400 = vadd.f32 %v1398, %v1399
        %v1401 = vrot.slane %v1400, 1
        %v1402 = vadd.f32 %v1400, %v1401
        %v1403 = vmul.f32 %v1382, %v1382
        %v1404 = vmul.f32 %v1383, %v1383
        %v1405 = vmul.f32 %v1384, %v1384
        %v1406 = vmul.f32 %v1385, %v1385
        %v1407 = vmul.f32 %v1386, %v1386
        %v1408 = vmul.f32 %v1387, %v1387
        %v1409 = vmul.f32 %v1388, %v1388
        %v1410 = vmul.f32 %v1389, %v1389
        %v1411 = vadd.f32 %v1403, %v1404
        %v1412 = vadd.f32 %v1411, %v1405
        %v1413 = vadd.f32 %v1412, %v1406
        %v1414 = vadd.f32 %v1413, %v1407
        %v1415 = vadd.f32 %v1414, %v1408
        %v1416 = vadd.f32 %v1415, %v1409
        %v1417 = vadd.f32 %v1416, %v1410
        %v1418 = vrot.slane %v1417, 4
        %v1419 = vadd.f32 %v1417, %v1418
        %v1420 = vrot.slane %v1419, 2
        %v1421 = vadd.f32 %v1419, %v1420
        %v1422 = vrot.slane %v1421, 1
        %v1423 = vadd.f32 %v1421, %v1422
        %v1424 = vld [vmem:[%s272] sm:$0x3]
        %vm1425 = vcmask 1040384
        %v1426 = vsel %vm1425, %v1402, %v1423
        %v1427 = vadd.f32 %v1424, %v1426
        %1428 = vst [vmem:[%s272] sm:$0x3] %v1427
        %s1429 = sand.u32 %s147, 1
        %s1430 = scalar_lea.sflag [#allocation3], %s1429
        %s1431 = sand.u32 %s147, 1
        %s1432 = smul.addr %s1431, 2
        %s1433 = scalar_lea.vmem [#allocation2], %s1432
        // Predicated region
        $region41: #{tpu_custom_call.1} parent=35 // pred_check
          %p1434 = pneg %p157
        $region42: #{tpu_custom_call.1} parent=35 // pred_check_branch
          %1436 = sbr.rel (%p1434) target = $region44
        $region43: #{tpu_custom_call.1} parent=35 // pred_region
          %s1438 = ssub.s32 32, 32
          %1439 = vsyncadd %s1430, %s1438
          %s1440 = smul.addr %s22, 32
          %s1441 = scalar_lea.hbm %s4, %s1440
          %s1443 = sshll.u32 %s1433, 4
          %s1444 = int_to_ptr.vmem [resolvable:$true] %s1443
          %1446 = dma.vmem_to_hbm [thread:$0]  %s1444, 32, %s1441, %s1430
        $region44: #{tpu_custom_call.1} parent=35 // pred_fallthru
          _
      $region36: #{tpu_custom_call.1} parent=5 // pred_fallthru
        _
      %p1447 = scmp.le.s32.totalorder 2, %s13
      // Predicated region
      $region45: #{tpu_custom_call.1} parent=5 // pred_check
        %p1448 = pneg %p1447
      $region46: #{tpu_custom_call.1} parent=5 // pred_check_branch
        %1450 = sbr.rel (%p1448) target = $region48
      $region47: #{tpu_custom_call.1} parent=5 // pred_region
        %s1451 = ssub.s32 %s13, 2
        // Predicated region
        $region49: #{tpu_custom_call.1} parent=47 // pred_check
          %p1452 = pneg %p163
        $region50: #{tpu_custom_call.1} parent=47 // pred_check_branch
          %1454 = sbr.rel (%p1452) target = $region52
        $region51: #{tpu_custom_call.1} parent=47 // pred_region
          %s1455 = sand.u32 %s148, 1
          %s1456 = scalar_lea.sflag [#allocation3], %s1455
          %s1457 = sand.u32 %s148, 1
          %s1458 = smul.addr %s1457, 2
          %s1459 = scalar_lea.vmem [#allocation2], %s1458
          %1460 = dma.done %s1456, 32
        $region52: #{tpu_custom_call.1} parent=47 // pred_fallthru
          _
      $region48: #{tpu_custom_call.1} parent=5 // pred_fallthru
        _
    $region6: #{tpu_custom_call.1} parent=1 // loop_footer
      %s17 = sadd.s32 1, %s13
    $region7: #{tpu_custom_call.1} parent=1 // loop_footer_branch
      %12 = sbr.rel target = $region3
    $region8: #{tpu_custom_call.1} parent=1 // loop_exit
      _
    %1461 = vsyncpa [#allocation3], 1
    %s1462 = scalar_lea.sflag [#allocation3], 1
    %1463 = vsyncpa %s1462, 1

</llo_original>
